<compile_context>
chip_gen: v5e
topology: v5e:2x2
jax: 0.10.0
libtpu: 0.0.40
codegen_flags: <defaults>
</compile_context>

<pallas_src>
import functools

import jax
import jax.numpy as jnp
import numpy as np
from jax.experimental import pallas as pl
from jax.experimental.pallas import tpu as pltpu


# --------------------------------------------------------------------------- #
# Kernels
# --------------------------------------------------------------------------- #
def _fourier_fused_kernel(x_ref, w_ref, b_ref, o_ref):
    """One (tm, tn) output tile; whole K contraction in a single MXU matmul."""
    acc = jnp.dot(x_ref[...], w_ref[...], preferred_element_type=jnp.float32)
    o_ref[...] = jnp.sin(acc + b_ref[...]).astype(o_ref.dtype)


def _fourier_reduce_kernel(x_ref, w_ref, b_ref, o_ref):
    """K-tiled fallback; accumulates into the resident f32 output block."""
    k = pl.program_id(2)

    @pl.when(k == 0)
    def _():
        o_ref[...] = jnp.zeros_like(o_ref)

    o_ref[...] += jnp.dot(x_ref[...], w_ref[...], preferred_element_type=jnp.float32)

    @pl.when(k == pl.num_programs(2) - 1)
    def _():
        o_ref[...] = jnp.sin(o_ref[...] + b_ref[...])


# --------------------------------------------------------------------------- #
# Wrapper
# --------------------------------------------------------------------------- #
def _round_up(a, b):
    return ((a + b - 1) // b) * b


def _vmem_capacity_bytes():
    try:
        return int(pltpu.get_tpu_info().vmem_capacity_bytes)
    except Exception:
        return 64 << 20  # conservative: v7x per-TC VMEM


@functools.partial(jax.jit, static_argnames=("out_features", "tm", "tn", "tk"))
def fourier_layer(x, w_t, bias, *, out_features=None, tm=512, tn=512, tk=512):
    """y = sin(x @ w_t + bias).

    x:    [..., K]   activations (any leading dims)
    w_t:  [K, Np]    pre-transposed (and N-padded) linear weight (== torch weight.T)
    bias: [Np]       bias, padded consistently with w_t
    out_features:    true (unpadded) N; defaults to w_t.shape[1]
    """
    orig_shape = x.shape
    K = orig_shape[-1]
    Np = w_t.shape[1]
    n_valid = out_features if out_features is not None else Np

    x2 = x.reshape(-1, K)
    M = x2.shape[0]
    out_dtype = x.dtype

    # Normalize N to a lane-dense multiple of 128.  This is a NO-OP when params
    # come from init_fourier_params (padded once there) -- kept only as a
    # safety net for hand-built params.
    if Np % 128 != 0:
        pad = _round_up(Np, 128) - Np
        w_t = jnp.pad(w_t, ((0, 0), (0, pad)))
        bias = jnp.pad(bias, (0, pad))
        Np += pad
    b2 = bias.reshape(1, Np)

    cap = _vmem_capacity_bytes()
    budget = int(0.6 * cap)  # leave headroom for compiler scratch

    # lane-dense N tile (multiple of 128, divides Np)
    tn_ = max(128, (min(tn, Np) // 128) * 128)
    while Np % tn_ != 0:
        tn_ -= 128

    # Fast path iff a double-buffered (K, tn_) weight column block fits easily.
    fast_ok = 2 * 4 * K * tn_ <= budget // 2

    if fast_ok:
        # ---------- fast path: resident weight, grid only over M (and N) ---------
        def _need(tm_v):
            # double-buffered x / w / bias / out tiles (all f32)
            return 4 * (2 * tm_v * K + 2 * K * tn_ + 2 * tn_ + 2 * tm_v * tn_)

        tm_ = min(tm, _round_up(M, 8))
        while tm_ > 8 and _need(tm_) > budget:
            tm_ = max(8, _round_up(tm_ // 2, 8))
        # give both v7x TensorCores a parallel M block when possible
        if pl.cdiv(M, tm_) == 1 and M > 8:
            tm_ = _round_up(pl.cdiv(M, 2), 8)

        grid_m = pl.cdiv(M, tm_)
        grid_n = Np // tn_

        vmem_needed = _need(tm_)
        vmem_limit = int(
            max(vmem_needed, min(max(2 * vmem_needed, 16 << 20), int(0.75 * cap)))
        )

        # x is read once (block index changes only with i); the weight is read
        # once when grid_n == 1, else once per M block.
        w_reads = 1 if grid_n == 1 else grid_m
        cost = pl.CostEstimate(
            flops=2 * M * K * Np,
            transcendentals=M * Np,
            bytes_accessed=4 * (M * K + w_reads * K * Np + Np)
            + M * Np * np.dtype(out_dtype).itemsize,
        )

        out = pl.pallas_call(
            _fourier_fused_kernel,
            out_shape=jax.ShapeDtypeStruct((M, Np), out_dtype),
            grid_spec=pltpu.PrefetchScalarGridSpec(
                num_scalar_prefetch=0,
                grid=(grid_m, grid_n),
                in_specs=[
                    pl.BlockSpec((tm_, K), lambda i, j: (i, 0)),   # x tile (full K)
                    pl.BlockSpec((K, tn_), lambda i, j: (0, j)),   # weight column block
                    pl.BlockSpec((1, tn_), lambda i, j: (0, j)),   # bias block
                ],
                out_specs=pl.BlockSpec((tm_, tn_), lambda i, j: (i, j)),
            ),
            compiler_params=pltpu.CompilerParams(
                dimension_semantics=("parallel", "parallel"),
                vmem_limit_bytes=vmem_limit,
            ),
            cost_estimate=cost,
        )(x2, w_t, b2)
    else:
        # ---------- fallback for very large K: tiled reduction over K -------------
        # TODO(synk): if this path ever becomes hot, pre-pad K at init as well.
        tk_ = min(tk, _round_up(K, 128))
        Kp = _round_up(K, tk_)
        if Kp != K:
            x2 = jnp.pad(x2, ((0, 0), (0, Kp - K)))
            w_t = jnp.pad(w_t, ((0, Kp - K), (0, 0)))

        tm_ = min(tm, _round_up(M, 8))
        if pl.cdiv(M, tm_) == 1 and M > 8:
            tm_ = _round_up(pl.cdiv(M, 2), 8)
        grid = (pl.cdiv(M, tm_), Np // tn_, Kp // tk_)

        vmem_needed = 4 * (2 * tm_ * tk_ + 2 * tk_ * tn_ + 2 * tn_ + 2 * tm_ * tn_)
        vmem_limit = int(
            max(vmem_needed, min(max(2 * vmem_needed, 16 << 20), int(0.75 * cap)))
        )
        cost = pl.CostEstimate(
            flops=2 * M * Kp * Np,
            transcendentals=M * Np,
            bytes_accessed=4
            * ((Np // tn_) * M * Kp + pl.cdiv(M, tm_) * Kp * Np + M * Np + Np),
        )

        out = pl.pallas_call(
            _fourier_reduce_kernel,
            out_shape=jax.ShapeDtypeStruct((M, Np), jnp.float32),
            grid_spec=pltpu.PrefetchScalarGridSpec(
                num_scalar_prefetch=0,
                grid=grid,
                in_specs=[
                    pl.BlockSpec((tm_, tk_), lambda i, j, k: (i, k)),
                    pl.BlockSpec((tk_, tn_), lambda i, j, k: (k, j)),
                    pl.BlockSpec((1, tn_), lambda i, j, k: (0, j)),
                ],
                out_specs=pl.BlockSpec((tm_, tn_), lambda i, j, k: (i, j)),
            ),
            compiler_params=pltpu.CompilerParams(
                dimension_semantics=("parallel", "parallel", "arbitrary"),
                vmem_limit_bytes=vmem_limit,
            ),
            cost_estimate=cost,
        )(x2, w_t, b2)
        out = out.astype(out_dtype)

    if Np != n_valid:
        out = out[:, :n_valid]
    return out.reshape(orig_shape[:-1] + (n_valid,))


# --------------------------------------------------------------------------- #
# Parameter init (PyTorch-equivalent), done ONCE so forward never pads
# --------------------------------------------------------------------------- #
def init_fourier_params(key, in_features, out_features, weight_scale):
    """nn.Linear default init U(-1/sqrt(in), 1/sqrt(in)) scaled by weight_scale,
    bias ~ U(-pi, pi).  Weight is stored PRE-TRANSPOSED (K, Np) with the
    out_features axis padded to a multiple of 128 here, one time."""
    kw, kb = jax.random.split(key)
    bound = 1.0 / np.sqrt(in_features)
    weight = jax.random.uniform(
        kw, (out_features, in_features), jnp.float32, -bound, bound
    ) * weight_scale
    bias = jax.random.uniform(kb, (out_features,), jnp.float32, -np.pi, np.pi)

    w_t = weight.T  # one-time transpose: (K, N)
    n_pad = _round_up(out_features, 128)
    if n_pad != out_features:
        w_t = jnp.pad(w_t, ((0, 0), (0, n_pad - out_features)))
        bias = jnp.pad(bias, (0, n_pad - out_features))
    return jnp.asarray(w_t), jnp.asarray(bias)  # (K, Np), (Np,)


if __name__ == "__main__":
    key = jax.random.PRNGKey(0)
    k_x, k_p = jax.random.split(key)

    # small shapes consistent with the module: a batch of feature vectors
    M, in_features, out_features = 128, 64, 128
    weight_scale = 30.0

    x = jax.random.normal(k_x, (M, in_features), jnp.float32)
    w_t, bias = init_fourier_params(k_p, in_features, out_features, weight_scale)

    out = jax.block_until_ready(
        fourier_layer(x, w_t, bias, out_features=out_features)
    )

    # correctness check against plain-JAX reference (same math as torch module)
    ref = jnp.sin(x @ w_t[:, :out_features] + bias[:out_features])
    np.testing.assert_allclose(np.asarray(out), np.asarray(ref), atol=1e-5, rtol=1e-5)

    print("KERNEL_OK")
</pallas_src>

<mosaic_0001>
module attributes {stable_mosaic.version = 11 : i64} {
  func.func @_fourier_fused_kernel(%arg0: i32, %arg1: i32, %arg2: memref<64x64xf32, #tpu.memory_space<vmem>>, %arg3: memref<64x128xf32, #tpu.memory_space<vmem>>, %arg4: memref<1x128xf32, #tpu.memory_space<vmem>>, %arg5: memref<64x128xf32, #tpu.memory_space<vmem>>) attributes {dimension_semantics = [#tpu.dimension_semantics<parallel>, #tpu.dimension_semantics<parallel>], iteration_bounds = array<i64: 2, 1>, scalar_prefetch = 0 : i64, scratch_operands = 0 : i64, tpu.core_type = #tpu.core_type<tc>, window_params = [{transform_indices = @transform_0, window_bounds = array<i64: 64, 64>}, {transform_indices = @transform_1, window_bounds = array<i64: 64, 128>}, {transform_indices = @transform_2, window_bounds = array<i64: 1, 128>}, {transform_indices = @transform_3, window_bounds = array<i64: 64, 128>}]} {
    %c0 = arith.constant 0 : index
    %c0_0 = arith.constant 0 : index
    %0 = vector.load %arg2[%c0, %c0_0] : memref<64x64xf32, #tpu.memory_space<vmem>>, vector<64x64xf32>
    %c0_1 = arith.constant 0 : index
    %c0_2 = arith.constant 0 : index
    %1 = vector.load %arg3[%c0_1, %c0_2] : memref<64x128xf32, #tpu.memory_space<vmem>>, vector<64x128xf32>
    %cst = arith.constant dense<0.000000e+00> : vector<64x128xf32>
    %2 = tpu.matmul %0, %1, %cst {dimension_numbers = #tpu.dot_dimension_numbers<[1], [0], [0], [1], [0, 0, 1, 1], [], []>} : vector<64x64xf32>, vector<64x128xf32>, vector<64x128xf32> -> vector<64x128xf32>
    %c0_3 = arith.constant 0 : index
    %c0_4 = arith.constant 0 : index
    %3 = vector.load %arg4[%c0_3, %c0_4] : memref<1x128xf32, #tpu.memory_space<vmem>>, vector<1x128xf32>
    %4 = vector.broadcast %3 : vector<1x128xf32> to vector<64x128xf32>
    %5 = arith.addf %2, %4 : vector<64x128xf32>
    %6 = math.sin %5 : vector<64x128xf32>
    %c0_5 = arith.constant 0 : index
    %c0_6 = arith.constant 0 : index
    %7 = vector.load %arg5[%c0_5, %c0_6] : memref<64x128xf32, #tpu.memory_space<vmem>>, vector<64x128xf32>
    tpu.vector_store %arg5[%c0_5, %c0_6], %6 {strides = array<i32>} : memref<64x128xf32, #tpu.memory_space<vmem>>, vector<64x128xf32>,
    return
  }
  func.func @transform_0(%arg0: i32, %arg1: i32) -> (i32, i32) {
    %c0_i32 = arith.constant 0 : i32
    %c0_i32_0 = arith.constant 0 : i32
    return %arg0, %c0_i32 : i32, i32
  }
  func.func @transform_1(%arg0: i32, %arg1: i32) -> (i32, i32) {
    %c0_i32 = arith.constant 0 : i32
    %c0_i32_0 = arith.constant 0 : i32
    return %c0_i32, %arg1 : i32, i32
  }
  func.func @transform_2(%arg0: i32, %arg1: i32) -> (i32, i32) {
    %c0_i32 = arith.constant 0 : i32
    %c0_i32_0 = arith.constant 0 : i32
    return %c0_i32, %arg1 : i32, i32
  }
  func.func @transform_3(%arg0: i32, %arg1: i32) -> (i32, i32) {
    %c0_i32 = arith.constant 0 : i32
    return %arg0, %arg1 : i32, i32
  }
}

</mosaic_0001>

<llo_original>
// kernel: fourier_layer.1
$region0: #{fourier_layer.1}
  #allocation0 [shape = 'u32[]', space=smem, size = 0x4, offset = 0x4, fixed_abs, tag = 'smem constant byte address 0x4 - core index']
  #allocation1 [shape = 'u32[72,128]{1,0:T(1,128)}', space=vmem, size = 0x9000, scoped, tag = 'internal scratch']
  %s0 = inlined_call_operand.vmem [shape: f32[128,64], index: 0, kind: input, shape index: {}]
  %s1 = inlined_call_operand.vmem [shape: f32[64,128], index: 1, kind: input, shape index: {}]
  %s2 = inlined_call_operand.vmem [shape: f32[1,128], index: 2, kind: input, shape index: {}]
  %s3 = inlined_call_operand.hbm [shape: f32[128,128], index: 3, kind: output, shape index: {}]
  %s4 = sld [smem:[#allocation0]]
  $region45: #{fourier_layer.1} parent=0
    _
  %s6 = ssub.s32 1, %s4
  %s7 = scalar_select 0, %s6, %s4
  $region1: #{fourier_layer.1} parent=0
    #allocation2 [shape = 'u8[65536]{0}', space=vmem, size = 0x10000, scoped, tag = 'output window, operand 0']
    #allocation3 [shape = 's32[2]{0}', space=sflag, size = 0x8, scoped, tag = 'scoped memory for fourier_layer.1']
    %8 = vsyncpa [#allocation3], 0
    %s9 = scalar_lea.sflag [#allocation3], 1
    %10 = vsyncpa %s9, 0
    loop: start=0, step=1, limit=4
    $region2: #{fourier_layer.1} parent=1 // loop_pre_header
      _
    $region3: #{fourier_layer.1} parent=1 // loop_header
      %s12 = sphi 0, %s16
      %p13 = scmp.ge.s32.totalorder %s12, 4
      %s19 = sphi 0, %s31
      %s20 = sphi 0, %s27
      %s21 = sphi 0, %s19
      %s22 = sphi 0, %s20
      %s23 = sphi 0, %s21
      %s24 = sphi 0, %s22
      %s34 = sphi 0, %s36
      %s37 = sphi 0, %s34
      %s38 = sphi 0, %s37
      %s54 = sphi 0, %s38
      %s60 = sphi 0, %s62
      %s63 = sphi 0, %s60
      %s64 = sphi 0, %s63
      %s80 = sphi 0, %s64
      %s86 = sphi 0, %s88
      %s89 = sphi 0, %s86
      %s90 = sphi 0, %s89
      %s106 = sphi 0, %s90
      %s114 = sphi 0, %s116
      %s117 = sphi 0, %s114
      %s118 = sphi 0, %s117
      %s134 = sphi 0, %s118
    $region4: #{fourier_layer.1} parent=1 // loop_header_branch
      %15 = sbr.rel (%p13) target = $region8
    $region5: #{fourier_layer.1} parent=1 // loop_body
      %s17 = ssub.s32 %s12, 1
      %s18 = ssub.s32 %s12, 2
      %s25 = sadd.s32 1, %s20
      %p26 = scmp.ge.s32.totalorder %s25, 1
      %s27 = scalar_select %p26, 0, %s25
      %s28 = sadd.s32 1, %s19
      %s29 = scalar_select %p26, %s28, %s19
      %p30 = scmp.ge.s32.totalorder %s29, 2
      %s31 = scalar_select %p30, 0, %s29
      %s32 = ssub.s32 %s19, %s31
      %p33 = scmp.eq.s32.totalorder %s32, 0
      %s35 = sadd.s32 %s34, 1
      %s36 = scalar_select %p33, %s34, %s35
      %p39 = pneg %p33
      %p40 = scmp.eq.s32.totalorder %s12, 1
      %p41 = por %p39, %p40
      %p42 = scmp.ne.s32.totalorder %s34, %s37
      %p43 = scmp.eq.s32.totalorder %s12, 0
      %p44 = por %p42, %p43
      %p45 = scmp.ne.s32.totalorder %s34, %s37
      %p46 = scmp.eq.s32.totalorder %s17, 1
      %p47 = por %p45, %p46
      %p48 = scmp.ne.s32.totalorder %s37, %s38
      %p49 = scmp.eq.s32.totalorder %s17, 0
      %p50 = por %p48, %p49
      %p51 = scmp.ne.s32.totalorder %s37, %s38
      %p52 = scmp.eq.s32.totalorder %s18, 1
      %p53 = por %p51, %p52
      %p55 = scmp.ne.s32.totalorder %s38, %s54
      %p56 = scmp.eq.s32.totalorder %s18, 0
      %p57 = por %p55, %p56
      %s58 = ssub.s32 %s20, %s27
      %p59 = scmp.eq.s32.totalorder %s58, 0
      %s61 = sadd.s32 %s60, 1
      %s62 = scalar_select %p59, %s60, %s61
      %p65 = pneg %p59
      %p66 = scmp.eq.s32.totalorder %s12, 1
      %p67 = por %p65, %p66
      %p68 = scmp.ne.s32.totalorder %s60, %s63
      %p69 = scmp.eq.s32.totalorder %s12, 0
      %p70 = por %p68, %p69
      %p71 = scmp.ne.s32.totalorder %s60, %s63
      %p72 = scmp.eq.s32.totalorder %s17, 1
      %p73 = por %p71, %p72
      %p74 = scmp.ne.s32.totalorder %s63, %s64
      %p75 = scmp.eq.s32.totalorder %s17, 0
      %p76 = por %p74, %p75
      %p77 = scmp.ne.s32.totalorder %s63, %s64
      %p78 = scmp.eq.s32.totalorder %s18, 1
      %p79 = por %p77, %p78
      %p81 = scmp.ne.s32.totalorder %s64, %s80
      %p82 = scmp.eq.s32.totalorder %s18, 0
      %p83 = por %p81, %p82
      %s84 = ssub.s32 %s20, %s27
      %p85 = scmp.eq.s32.totalorder %s84, 0
      %s87 = sadd.s32 %s86, 1
      %s88 = scalar_select %p85, %s86, %s87
      %p91 = pneg %p85
      %p92 = scmp.eq.s32.totalorder %s12, 1
      %p93 = por %p91, %p92
      %p94 = scmp.ne.s32.totalorder %s86, %s89
      %p95 = scmp.eq.s32.totalorder %s12, 0
      %p96 = por %p94, %p95
      %p97 = scmp.ne.s32.totalorder %s86, %s89
      %p98 = scmp.eq.s32.totalorder %s17, 1
      %p99 = por %p97, %p98
      %p100 = scmp.ne.s32.totalorder %s89, %s90
      %p101 = scmp.eq.s32.totalorder %s17, 0
      %p102 = por %p100, %p101
      %p103 = scmp.ne.s32.totalorder %s89, %s90
      %p104 = scmp.eq.s32.totalorder %s18, 1
      %p105 = por %p103, %p104
      %p107 = scmp.ne.s32.totalorder %s90, %s106
      %p108 = scmp.eq.s32.totalorder %s18, 0
      %p109 = por %p107, %p108
      %s110 = ssub.s32 %s19, %s31
      %s111 = ssub.s32 %s20, %s27
      %s112 = sor.u32 %s110, %s111
      %p113 = scmp.eq.s32.totalorder %s112, 0
      %s115 = sadd.s32 %s114, 1
      %s116 = scalar_select %p113, %s114, %s115
      %p119 = pneg %p113
      %p120 = scmp.eq.s32.totalorder %s12, 1
      %p121 = por %p119, %p120
      %p122 = scmp.ne.s32.totalorder %s114, %s117
      %p123 = scmp.eq.s32.totalorder %s12, 0
      %p124 = por %p122, %p123
      %p125 = scmp.ne.s32.totalorder %s114, %s117
      %p126 = scmp.eq.s32.totalorder %s17, 1
      %p127 = por %p125, %p126
      %p128 = scmp.ne.s32.totalorder %s117, %s118
      %p129 = scmp.eq.s32.totalorder %s17, 0
      %p130 = por %p128, %p129
      %p131 = scmp.ne.s32.totalorder %s117, %s118
      %p132 = scmp.eq.s32.totalorder %s18, 1
      %p133 = por %p131, %p132
      %p135 = scmp.ne.s32.totalorder %s118, %s134
      %p136 = scmp.eq.s32.totalorder %s18, 0
      %p137 = por %p135, %p136
      %p138 = scmp.le.s32.totalorder 1, %s12
      %p139 = scmp.lt.s32.totalorder %s12, 3
      %p140 = pnand %p138, %p139
      %p141 = pneg %p140
      // Predicated region
      $region9: #{fourier_layer.1} parent=5 // pred_check
        _
      $region10: #{fourier_layer.1} parent=5 // pred_check_branch
        %143 = sbr.rel (%p140) target = $region12
      $region11: #{fourier_layer.1} parent=5 // pred_region
        %s144 = ssub.s32 %s12, 1
        // Predicated region
        $region13: #{fourier_layer.1} parent=11 // pred_check
          %p145 = pneg %p76
        $region14: #{fourier_layer.1} parent=11 // pred_check_branch
          %147 = sbr.rel (%p145) target = $region16
        $region15: #{fourier_layer.1} parent=11 // pred_region
          %p148 = scmp.lt.s32.totalorder %s22, 0
          %s149 = scalar_select %p148, %s22, 0
          %s150 = smul.addr %s149, 8
          %s151 = scalar_lea.vmem %s1, %s150
        $region16: #{fourier_layer.1} parent=11 // pred_fallthru
          _
        // Predicated region
        $region17: #{fourier_layer.1} parent=11 // pred_check
          %p152 = pneg %p102
        $region18: #{fourier_layer.1} parent=11 // pred_check_branch
          %154 = sbr.rel (%p152) target = $region20
        $region19: #{fourier_layer.1} parent=11 // pred_region
          %p155 = scmp.lt.s32.totalorder %s22, 0
          %s156 = scalar_select %p155, %s22, 0
          %s157 = scalar_lea.vmem %s2, %s156
        $region20: #{fourier_layer.1} parent=11 // pred_fallthru
          _
      $region12: #{fourier_layer.1} parent=5 // pred_fallthru
        _
      %p158 = scmp.lt.s32.totalorder %s12, 2
      // Predicated region
      $region21: #{fourier_layer.1} parent=5 // pred_check
        %p159 = pneg %p158
      $region22: #{fourier_layer.1} parent=5 // pred_check_branch
        %161 = sbr.rel (%p159) target = $region24
      $region23: #{fourier_layer.1} parent=5 // pred_region
        // Predicated region
        $region25: #{fourier_layer.1} parent=23 // pred_check
          %p162 = pneg %p44
        $region26: #{fourier_layer.1} parent=23 // pred_check_branch
          %164 = sbr.rel (%p162) target = $region28
        $region27: #{fourier_layer.1} parent=23 // pred_region
          %s165 = smul.u32 8, %s19
          %p166 = scmp.lt.s32.totalorder %s165, 15
          %s167 = scalar_select %p166, %s165, 15
          %s168 = smul.addr %s167, 8
          %s169 = scalar_lea.vmem %s0, %s168
          %s170 = smul.u32 8, %s19
        $region28: #{fourier_layer.1} parent=23 // pred_fallthru
          _
      $region24: #{fourier_layer.1} parent=5 // pred_fallthru
        _
      %p171 = scmp.le.s32.totalorder 1, %s12
      %p172 = scmp.lt.s32.totalorder %s12, 3
      %p173 = pnand %p171, %p172
      %p174 = pneg %p173
      // Predicated region
      $region29: #{fourier_layer.1} parent=5 // pred_check
        _
      $region30: #{fourier_layer.1} parent=5 // pred_check_branch
        %176 = sbr.rel (%p173) target = $region32
      $region31: #{fourier_layer.1} parent=5 // pred_region
        %s177 = ssub.s32 %s12, 1
        %s178 = smul.u32 8, %s21
        %p179 = scmp.lt.s32.totalorder %s178, 15
        %s180 = scalar_select %p179, %s178, 15
        %s181 = smul.addr %s180, 8
        %s182 = scalar_lea.vmem %s0, %s181
        %p183 = pneg %p50
        %p184 = pneg %p47
        %p185 = scmp.lt.s32.totalorder %s22, 0
        %s186 = scalar_select %p185, %s22, 0
        %s187 = smul.addr %s186, 8
        %s188 = scalar_lea.vmem %s1, %s187
        %p189 = pneg %p76
        %p190 = pneg %p73
        %p191 = scmp.lt.s32.totalorder %s22, 0
        %s192 = scalar_select %p191, %s22, 0
        %s193 = scalar_lea.vmem %s2, %s192
        %p194 = pneg %p102
        %p195 = pneg %p99
        %p196 = pneg %p130
        %p197 = pneg %p127
        %s198 = sand.u32 %s117, 1
        %s199 = scalar_lea.sflag [#allocation3], %s198
        %s200 = sand.u32 %s117, 1
        %s201 = smul.addr %s200, 64
        %s202 = scalar_lea.vmem [#allocation2], %s201
        %s203 = smul.u32 8, %s21
        %p204 = scmp.lt.s32.totalorder %s203, 15
        %s205 = scalar_select %p204, %s203, 15
        %s206 = smul.addr %s205, 8
        %s207 = scalar_lea.vmem %s0, %s206
        %s208 = smul.u32 8, %s21
        %p209 = scmp.lt.s32.totalorder %s22, 0
        %s210 = scalar_select %p209, %s22, 0
        %s211 = smul.addr %s210, 8
        %s212 = scalar_lea.vmem %s1, %s211
        %p213 = scmp.lt.s32.totalorder %s22, 0
        %s214 = scalar_select %p213, %s22, 0
        %s215 = scalar_lea.vmem %s2, %s214
        %s216 = smul.u32 8, %s21
        %v217 = vld [vmem:[%s207] sm:$0xff]
        %v218 = vld [vmem:[%s207 + $0x8] sm:$0xff]
        %v219 = vld [vmem:[%s207 + $0x10] sm:$0xff]
        %v220 = vld [vmem:[%s207 + $0x18] sm:$0xff]
        %v221 = vld [vmem:[%s207 + $0x20] sm:$0xff]
        %v222 = vld [vmem:[%s207 + $0x28] sm:$0xff]
        %v223 = vld [vmem:[%s207 + $0x30] sm:$0xff]
        %v224 = vld [vmem:[%s207 + $0x38] sm:$0xff]
        %v225 = vld [vmem:[%s212] sm:$0xff]
        %v226 = vld [vmem:[%s212 + $0x8] sm:$0xff]
        %v227 = vld [vmem:[%s212 + $0x10] sm:$0xff]
        %v228 = vld [vmem:[%s212 + $0x18] sm:$0xff]
        %v229 = vld [vmem:[%s212 + $0x20] sm:$0xff]
        %v230 = vld [vmem:[%s212 + $0x28] sm:$0xff]
        %v231 = vld [vmem:[%s212 + $0x30] sm:$0xff]
        %v232 = vld [vmem:[%s212 + $0x38] sm:$0xff]
        %v233 = vld [vmem:[%s215] sm:$0x1]
        %v235 = vperm.slane %v233, 0
        %vm237 = vcmask 523264
        %v239 = vsel %vm237, %v217, 0
        %v242 = vsel %vm237, %v218, 0
        %v245 = vsel %vm237, %v219, 0
        %v248 = vsel %vm237, %v220, 0
        %v251 = vsel %vm237, %v221, 0
        %v254 = vsel %vm237, %v222, 0
        %v257 = vsel %vm237, %v223, 0
        %v260 = vsel %vm237, %v224, 0
        %262 = vmatpush.msra.mxu0 0.0
        %263 = vmatpush.msra.mxu0 0.0
        %264 = vmatpush.msra.mxu0 0.0
        %265 = vmatpush.msra.mxu0 0.0
        %266 = vmatpush.msra.mxu0 0.0
        %267 = vmatpush.msra.mxu0 0.0
        %268 = vmatpush.msra.mxu0 0.0
        %269 = vmatpush.msra.mxu0 0.0
        %270 = vmatpush.msra.mxu0 %v232
        %271 = vmatpush.msra.mxu0 %v231
        %272 = vmatpush.msra.mxu0 %v230
        %273 = vmatpush.msra.mxu0 %v229
        %274 = vmatpush.msra.mxu0 %v228
        %275 = vmatpush.msra.mxu0 %v227
        %276 = vmatpush.msra.mxu0 %v226
        %277 = vmatpush.msra.mxu0 %v225
        %278 = vmatmul.f32.gmra.mxu0 %v239
        %v279 = vpop.f32.mrf.mxu0
        %v280 = vadd.f32 %v235, %v279
        %281 = vmatmul.f32.gmra.mxu0 %v242
        %v282 = vpop.f32.mrf.mxu0
        %v283 = vadd.f32 %v235, %v282
        %284 = vmatmul.f32.gmra.mxu0 %v245
        %v285 = vpop.f32.mrf.mxu0
        %v286 = vadd.f32 %v235, %v285
        %287 = vmatmul.f32.gmra.mxu0 %v248
        %v288 = vpop.f32.mrf.mxu0
        %v289 = vadd.f32 %v235, %v288
        %290 = vmatmul.f32.gmra.mxu0 %v251
        %v291 = vpop.f32.mrf.mxu0
        %v292 = vadd.f32 %v235, %v291
        %293 = vmatmul.f32.gmra.mxu0 %v254
        %v294 = vpop.f32.mrf.mxu0
        %v295 = vadd.f32 %v235, %v294
        %296 = vmatmul.f32.gmra.mxu0 %v257
        %v297 = vpop.f32.mrf.mxu0
        %v298 = vadd.f32 %v235, %v297
        %299 = vmatmul.f32.gmra.mxu0 %v260
        %v300 = vpop.f32.mrf.mxu0
        %v301 = vadd.f32 %v235, %v300
        %302 = vdwg.mxu0
        %v303 = vand.u32 2147483647, %v280
        %vm304 = vcmp.le.f32.partialorder %v303, 0.7853982
        %vm305 = vcmp.lt.s32.totalorder %v280, 0
        %v306 = vand.u32 %v280, 2139095040
        %v307 = vshrl.u32 %v306, 23
        %v308 = vsub.s32 %v307, 127
        %v309 = vand.u32 2147483647, %v280
        %v310 = vand.u32 %v309, 8388607
        %v311 = vor.u32 %v310, 8388608
        %v312 = vsub.s32 0, %v311
        %v313 = vadd.s32 %v308, 1
        %vm314 = vcmp.gt.s32.totalorder %v313, 0
        %v315 = vsel %vm314, %v313, 0
        %v316 = vshrl.u32 %v315, 5
        %v317 = vand.u32 %v315, 31
        %v318 = vsub.s32 32, %v317
        %v319 = vshrl.u32 683565275, %v318
        %v320 = vshll.u32 683565275, %v317
        %v321 = vshrl.u32 2475754826, %v318
        %v322 = vor.u32 %v320, %v321
        %v323 = vshll.u32 2475754826, %v317
        %v324 = vshrl.u32 2131351028, %v318
        %v325 = vor.u32 %v323, %v324
        %v326 = vshll.u32 2131351028, %v317
        %v327 = vshrl.u32 2102212464, %v318
        %v328 = vor.u32 %v326, %v327
        %v329 = vshll.u32 2102212464, %v317
        %v330 = vshrl.u32 920167782, %v318
        %v331 = vor.u32 %v329, %v330
        %v332 = vshll.u32 920167782, %v317
        %v333 = vshrl.u32 1326507024, %v318
        %v334 = vor.u32 %v332, %v333
        %vm335 = vcmp.lt.s32.totalorder %v316, 1
        %vm336 = vcmp.lt.s32.totalorder %v316, 2
        %vm337 = vcmp.lt.s32.totalorder %v316, 3
        %vm338 = vcmp.lt.s32.totalorder %v316, 4
        %v339 = vsel %vm335, %v319, %v322
        %v340 = vsel %vm338, %v328, 2102212464
        %v341 = vsel %vm337, %v325, %v340
        %v342 = vsel %vm336, %v339, %v341
        %v343 = vsel %vm335, %v322, %v325
        %v344 = vsel %vm338, %v331, 920167782
        %v345 = vsel %vm337, %v328, %v344
        %v346 = vsel %vm336, %v343, %v345
        %v347 = vsel %vm335, %v325, %v328
        %v348 = vsel %vm338, %v334, 1326507024
        %v349 = vsel %vm337, %v331, %v348
        %v350 = vsel %vm336, %v347, %v349
        %v351 = vshll.u32 %v311, 8
        %v352 = vand.u32 %v351, 65535
        %v353 = vshrl.u32 %v351, 16
        %v354 = vand.u32 %v350, 65535
        %v355 = vshrl.u32 %v350, 16
        %v356 = vmul.u32 %v352, %v354
        %v357 = vmul.u32 %v352, %v355
        %v358 = vmul.u32 %v353, %v354
        %v359 = vmul.u32 %v353, %v355
        %v360 = vshll.u32 %v357, 16
        %v361 = vshrl.u32 %v357, 16
        %v362 = vshll.u32 %v358, 16
        %v363 = vshrl.u32 %v358, 16
        %vm364 = vc.u32 %v356, %v360
        %v365 = vsel %vm364, 1, 0
        %v366 = vadd.s32 %v356, %v360
        %v367 = vadd.s32 %v359, %v365
        %vm368 = vc.u32 %v366, %v362
        %v369 = vsel %vm368, 1, 0
        %v370 = vadd.s32 %v366, %v362
        %v371 = vadd.s32 %v367, %v369
        %v372 = vadd.s32 %v371, %v361
        %v373 = vadd.s32 %v372, %v363
        %v374 = vand.u32 %v351, 65535
        %v375 = vshrl.u32 %v351, 16
        %v376 = vand.u32 %v346, 65535
        %v377 = vshrl.u32 %v346, 16
        %v378 = vmul.u32 %v374, %v376
        %v379 = vmul.u32 %v374, %v377
        %v380 = vmul.u32 %v375, %v376
        %v381 = vmul.u32 %v375, %v377
        %v382 = vshll.u32 %v379, 16
        %v383 = vshrl.u32 %v379, 16
        %v384 = vshll.u32 %v380, 16
        %v385 = vshrl.u32 %v380, 16
        %vm386 = vc.u32 %v378, %v382
        %v387 = vsel %vm386, 1, 0
        %v388 = vadd.s32 %v378, %v382
        %v389 = vadd.s32 %v381, %v387
        %vm390 = vc.u32 %v388, %v384
        %v391 = vsel %vm390, 1, 0
        %v392 = vadd.s32 %v388, %v384
        %v393 = vadd.s32 %v389, %v391
        %v394 = vadd.s32 %v393, %v383
        %v395 = vadd.s32 %v394, %v385
        %v396 = vmul.u32 %v351, %v342
        %v397 = vadd.s32 %v373, %v392
        %vm398 = vc.u32 %v373, %v392
        %v399 = vadd.s32 %v395, 1
        %v400 = vsel %vm398, %v399, %v395
        %v401 = vadd.s32 %v396, %v400
        %v402 = vadd.s32 %v401, 536870912
        %v403 = vshrl.u32 %v402, 30
        %v404 = vshll.u32 %v403, 30
        %v405 = vsub.s32 %v401, %v404
        %vm406 = vcmp.lt.s32.totalorder %v405, 0
        %v407 = vsub.s32 0, %v405
        %v408 = vsel %vm406, %v407, %v405
        %v409 = vclz %v408
        %v410 = vsub.s32 %v409, 2
        %vm411 = vcmp.gt.s32.totalorder 0, %v410
        %v412 = vsel %vm411, 0, %v410
        %v413 = vsub.s32 32, %v412
        %v414 = vshll.u32 %v405, %v412
        %v415 = vshrl.u32 %v397, %v413
        %v416 = vor.u32 %v414, %v415
        %v417 = vsub.s32 4294967266, %v412
        %v418 = vadd.s32 %v417, 127
        %v419 = vshll.u32 %v418, 23
        %v420 = vor.u32 4788187, %v419
        %v421 = vand.u32 2147483647, %v420
        %v423 = vcvt.s32.f32 %v416
        %v424 = vmul.f32 %v423, %v421
        %v425 = vxor.u32 %v424, 2147483648
        %v426 = vsel %vm305, %v425, %v424
        %v427 = vsub.s32 4, %v403
        %v428 = vsel %vm305, %v427, %v403
        %v429 = vsel %vm304, %v280, %v426
        %v430 = vsel %vm304, 0, %v428
        %v431 = vmul.f32 %v429, %v429
        %v432 = vmul.f32 %v431, -0.001358992
        %v433 = vadd.f32 %v432, 0.041655596
        %v434 = vmul.f32 %v431, %v433
        %v435 = vadd.f32 %v434, -0.4999988
        %v436 = vmul.f32 %v431, %v435
        %v437 = vadd.f32 1.0, %v436
        %v438 = vmul.f32 %v429, %v429
        %v439 = vmul.f32 %v438, -0.00019511016
        %v440 = vadd.f32 %v439, 0.008332121
        %v441 = vmul.f32 %v438, %v440
        %v442 = vadd.f32 %v441, -0.16666654
        %v443 = vmul.f32 %v438, %v442
        %v444 = vadd.f32 %v443, 1.0
        %v445 = vmul.f32 %v444, %v429
        %vm446 = vweird.f32 %v280
        %v447 = vadd.s32 %v430, 3
        %v448 = vand.u32 %v447, 3
        %vm449 = vcmp.lt.s32.totalorder %v448, 2
        %vm450 = vcmp.eq.s32.totalorder %v448, 0
        %v451 = vxor.u32 %v445, 2147483648
        %v452 = vsel %vm450, %v437, %v451
        %vm453 = vcmp.eq.s32.totalorder %v448, 2
        %v454 = vxor.u32 %v437, 2147483648
        %v455 = vsel %vm453, %v454, %v445
        %v456 = vsel %vm449, %v452, %v455
        %v457 = vsel %vm446, nan, %v456
        %v458 = vand.u32 2147483647, %v283
        %vm459 = vcmp.le.f32.partialorder %v458, 0.7853982
        %vm460 = vcmp.lt.s32.totalorder %v283, 0
        %v461 = vand.u32 %v283, 2139095040
        %v462 = vshrl.u32 %v461, 23
        %v463 = vsub.s32 %v462, 127
        %v464 = vand.u32 2147483647, %v283
        %v465 = vand.u32 %v464, 8388607
        %v466 = vor.u32 %v465, 8388608
        %v467 = vsub.s32 0, %v466
        %v468 = vadd.s32 %v463, 1
        %vm469 = vcmp.gt.s32.totalorder %v468, 0
        %v470 = vsel %vm469, %v468, 0
        %v471 = vshrl.u32 %v470, 5
        %v472 = vand.u32 %v470, 31
        %v473 = vsub.s32 32, %v472
        %v474 = vshrl.u32 683565275, %v473
        %v475 = vshll.u32 683565275, %v472
        %v476 = vshrl.u32 2475754826, %v473
        %v477 = vor.u32 %v475, %v476
        %v478 = vshll.u32 2475754826, %v472
        %v479 = vshrl.u32 2131351028, %v473
        %v480 = vor.u32 %v478, %v479
        %v481 = vshll.u32 2131351028, %v472
        %v482 = vshrl.u32 2102212464, %v473
        %v483 = vor.u32 %v481, %v482
        %v484 = vshll.u32 2102212464, %v472
        %v485 = vshrl.u32 920167782, %v473
        %v486 = vor.u32 %v484, %v485
        %v487 = vshll.u32 920167782, %v472
        %v488 = vshrl.u32 1326507024, %v473
        %v489 = vor.u32 %v487, %v488
        %vm490 = vcmp.lt.s32.totalorder %v471, 1
        %vm491 = vcmp.lt.s32.totalorder %v471, 2
        %vm492 = vcmp.lt.s32.totalorder %v471, 3
        %vm493 = vcmp.lt.s32.totalorder %v471, 4
        %v494 = vsel %vm490, %v474, %v477
        %v495 = vsel %vm493, %v483, 2102212464
        %v496 = vsel %vm492, %v480, %v495
        %v497 = vsel %vm491, %v494, %v496
        %v498 = vsel %vm490, %v477, %v480
        %v499 = vsel %vm493, %v486, 920167782
        %v500 = vsel %vm492, %v483, %v499
        %v501 = vsel %vm491, %v498, %v500
        %v502 = vsel %vm490, %v480, %v483
        %v503 = vsel %vm493, %v489, 1326507024
        %v504 = vsel %vm492, %v486, %v503
        %v505 = vsel %vm491, %v502, %v504
        %v506 = vshll.u32 %v466, 8
        %v507 = vand.u32 %v506, 65535
        %v508 = vshrl.u32 %v506, 16
        %v509 = vand.u32 %v505, 65535
        %v510 = vshrl.u32 %v505, 16
        %v511 = vmul.u32 %v507, %v509
        %v512 = vmul.u32 %v507, %v510
        %v513 = vmul.u32 %v508, %v509
        %v514 = vmul.u32 %v508, %v510
        %v515 = vshll.u32 %v512, 16
        %v516 = vshrl.u32 %v512, 16
        %v517 = vshll.u32 %v513, 16
        %v518 = vshrl.u32 %v513, 16
        %vm519 = vc.u32 %v511, %v515
        %v520 = vsel %vm519, 1, 0
        %v521 = vadd.s32 %v511, %v515
        %v522 = vadd.s32 %v514, %v520
        %vm523 = vc.u32 %v521, %v517
        %v524 = vsel %vm523, 1, 0
        %v525 = vadd.s32 %v521, %v517
        %v526 = vadd.s32 %v522, %v524
        %v527 = vadd.s32 %v526, %v516
        %v528 = vadd.s32 %v527, %v518
        %v529 = vand.u32 %v506, 65535
        %v530 = vshrl.u32 %v506, 16
        %v531 = vand.u32 %v501, 65535
        %v532 = vshrl.u32 %v501, 16
        %v533 = vmul.u32 %v529, %v531
        %v534 = vmul.u32 %v529, %v532
        %v535 = vmul.u32 %v530, %v531
        %v536 = vmul.u32 %v530, %v532
        %v537 = vshll.u32 %v534, 16
        %v538 = vshrl.u32 %v534, 16
        %v539 = vshll.u32 %v535, 16
        %v540 = vshrl.u32 %v535, 16
        %vm541 = vc.u32 %v533, %v537
        %v542 = vsel %vm541, 1, 0
        %v543 = vadd.s32 %v533, %v537
        %v544 = vadd.s32 %v536, %v542
        %vm545 = vc.u32 %v543, %v539
        %v546 = vsel %vm545, 1, 0
        %v547 = vadd.s32 %v543, %v539
        %v548 = vadd.s32 %v544, %v546
        %v549 = vadd.s32 %v548, %v538
        %v550 = vadd.s32 %v549, %v540
        %v551 = vmul.u32 %v506, %v497
        %v552 = vadd.s32 %v528, %v547
        %vm553 = vc.u32 %v528, %v547
        %v554 = vadd.s32 %v550, 1
        %v555 = vsel %vm553, %v554, %v550
        %v556 = vadd.s32 %v551, %v555
        %v557 = vadd.s32 %v556, 536870912
        %v558 = vshrl.u32 %v557, 30
        %v559 = vshll.u32 %v558, 30
        %v560 = vsub.s32 %v556, %v559
        %vm561 = vcmp.lt.s32.totalorder %v560, 0
        %v562 = vsub.s32 0, %v560
        %v563 = vsel %vm561, %v562, %v560
        %v564 = vclz %v563
        %v565 = vsub.s32 %v564, 2
        %vm566 = vcmp.gt.s32.totalorder 0, %v565
        %v567 = vsel %vm566, 0, %v565
        %v568 = vsub.s32 32, %v567
        %v569 = vshll.u32 %v560, %v567
        %v570 = vshrl.u32 %v552, %v568
        %v571 = vor.u32 %v569, %v570
        %v572 = vsub.s32 4294967266, %v567
        %v573 = vadd.s32 %v572, 127
        %v574 = vshll.u32 %v573, 23
        %v575 = vor.u32 4788187, %v574
        %v576 = vand.u32 2147483647, %v575
        %v578 = vcvt.s32.f32 %v571
        %v579 = vmul.f32 %v578, %v576
        %v580 = vxor.u32 %v579, 2147483648
        %v581 = vsel %vm460, %v580, %v579
        %v582 = vsub.s32 4, %v558
        %v583 = vsel %vm460, %v582, %v558
        %v584 = vsel %vm459, %v283, %v581
        %v585 = vsel %vm459, 0, %v583
        %v586 = vmul.f32 %v584, %v584
        %v587 = vmul.f32 %v586, -0.001358992
        %v588 = vadd.f32 %v587, 0.041655596
        %v589 = vmul.f32 %v586, %v588
        %v590 = vadd.f32 %v589, -0.4999988
        %v591 = vmul.f32 %v586, %v590
        %v592 = vadd.f32 1.0, %v591
        %v593 = vmul.f32 %v584, %v584
        %v594 = vmul.f32 %v593, -0.00019511016
        %v595 = vadd.f32 %v594, 0.008332121
        %v596 = vmul.f32 %v593, %v595
        %v597 = vadd.f32 %v596, -0.16666654
        %v598 = vmul.f32 %v593, %v597
        %v599 = vadd.f32 %v598, 1.0
        %v600 = vmul.f32 %v599, %v584
        %vm601 = vweird.f32 %v283
        %v602 = vadd.s32 %v585, 3
        %v603 = vand.u32 %v602, 3
        %vm604 = vcmp.lt.s32.totalorder %v603, 2
        %vm605 = vcmp.eq.s32.totalorder %v603, 0
        %v606 = vxor.u32 %v600, 2147483648
        %v607 = vsel %vm605, %v592, %v606
        %vm608 = vcmp.eq.s32.totalorder %v603, 2
        %v609 = vxor.u32 %v592, 2147483648
        %v610 = vsel %vm608, %v609, %v600
        %v611 = vsel %vm604, %v607, %v610
        %v612 = vsel %vm601, nan, %v611
        %v613 = vand.u32 2147483647, %v286
        %vm614 = vcmp.le.f32.partialorder %v613, 0.7853982
        %vm615 = vcmp.lt.s32.totalorder %v286, 0
        %v616 = vand.u32 %v286, 2139095040
        %v617 = vshrl.u32 %v616, 23
        %v618 = vsub.s32 %v617, 127
        %v619 = vand.u32 2147483647, %v286
        %v620 = vand.u32 %v619, 8388607
        %v621 = vor.u32 %v620, 8388608
        %v622 = vsub.s32 0, %v621
        %v623 = vadd.s32 %v618, 1
        %vm624 = vcmp.gt.s32.totalorder %v623, 0
        %v625 = vsel %vm624, %v623, 0
        %v626 = vshrl.u32 %v625, 5
        %v627 = vand.u32 %v625, 31
        %v628 = vsub.s32 32, %v627
        %v629 = vshrl.u32 683565275, %v628
        %v630 = vshll.u32 683565275, %v627
        %v631 = vshrl.u32 2475754826, %v628
        %v632 = vor.u32 %v630, %v631
        %v633 = vshll.u32 2475754826, %v627
        %v634 = vshrl.u32 2131351028, %v628
        %v635 = vor.u32 %v633, %v634
        %v636 = vshll.u32 2131351028, %v627
        %v637 = vshrl.u32 2102212464, %v628
        %v638 = vor.u32 %v636, %v637
        %v639 = vshll.u32 2102212464, %v627
        %v640 = vshrl.u32 920167782, %v628
        %v641 = vor.u32 %v639, %v640
        %v642 = vshll.u32 920167782, %v627
        %v643 = vshrl.u32 1326507024, %v628
        %v644 = vor.u32 %v642, %v643
        %vm645 = vcmp.lt.s32.totalorder %v626, 1
        %vm646 = vcmp.lt.s32.totalorder %v626, 2
        %vm647 = vcmp.lt.s32.totalorder %v626, 3
        %vm648 = vcmp.lt.s32.totalorder %v626, 4
        %v649 = vsel %vm645, %v629, %v632
        %v650 = vsel %vm648, %v638, 2102212464
        %v651 = vsel %vm647, %v635, %v650
        %v652 = vsel %vm646, %v649, %v651
        %v653 = vsel %vm645, %v632, %v635
        %v654 = vsel %vm648, %v641, 920167782
        %v655 = vsel %vm647, %v638, %v654
        %v656 = vsel %vm646, %v653, %v655
        %v657 = vsel %vm645, %v635, %v638
        %v658 = vsel %vm648, %v644, 1326507024
        %v659 = vsel %vm647, %v641, %v658
        %v660 = vsel %vm646, %v657, %v659
        %v661 = vshll.u32 %v621, 8
        %v662 = vand.u32 %v661, 65535
        %v663 = vshrl.u32 %v661, 16
        %v664 = vand.u32 %v660, 65535
        %v665 = vshrl.u32 %v660, 16
        %v666 = vmul.u32 %v662, %v664
        %v667 = vmul.u32 %v662, %v665
        %v668 = vmul.u32 %v663, %v664
        %v669 = vmul.u32 %v663, %v665
        %v670 = vshll.u32 %v667, 16
        %v671 = vshrl.u32 %v667, 16
        %v672 = vshll.u32 %v668, 16
        %v673 = vshrl.u32 %v668, 16
        %vm674 = vc.u32 %v666, %v670
        %v675 = vsel %vm674, 1, 0
        %v676 = vadd.s32 %v666, %v670
        %v677 = vadd.s32 %v669, %v675
        %vm678 = vc.u32 %v676, %v672
        %v679 = vsel %vm678, 1, 0
        %v680 = vadd.s32 %v676, %v672
        %v681 = vadd.s32 %v677, %v679
        %v682 = vadd.s32 %v681, %v671
        %v683 = vadd.s32 %v682, %v673
        %v684 = vand.u32 %v661, 65535
        %v685 = vshrl.u32 %v661, 16
        %v686 = vand.u32 %v656, 65535
        %v687 = vshrl.u32 %v656, 16
        %v688 = vmul.u32 %v684, %v686
        %v689 = vmul.u32 %v684, %v687
        %v690 = vmul.u32 %v685, %v686
        %v691 = vmul.u32 %v685, %v687
        %v692 = vshll.u32 %v689, 16
        %v693 = vshrl.u32 %v689, 16
        %v694 = vshll.u32 %v690, 16
        %v695 = vshrl.u32 %v690, 16
        %vm696 = vc.u32 %v688, %v692
        %v697 = vsel %vm696, 1, 0
        %v698 = vadd.s32 %v688, %v692
        %v699 = vadd.s32 %v691, %v697
        %vm700 = vc.u32 %v698, %v694
        %v701 = vsel %vm700, 1, 0
        %v702 = vadd.s32 %v698, %v694
        %v703 = vadd.s32 %v699, %v701
        %v704 = vadd.s32 %v703, %v693
        %v705 = vadd.s32 %v704, %v695
        %v706 = vmul.u32 %v661, %v652
        %v707 = vadd.s32 %v683, %v702
        %vm708 = vc.u32 %v683, %v702
        %v709 = vadd.s32 %v705, 1
        %v710 = vsel %vm708, %v709, %v705
        %v711 = vadd.s32 %v706, %v710
        %v712 = vadd.s32 %v711, 536870912
        %v713 = vshrl.u32 %v712, 30
        %v714 = vshll.u32 %v713, 30
        %v715 = vsub.s32 %v711, %v714
        %vm716 = vcmp.lt.s32.totalorder %v715, 0
        %v717 = vsub.s32 0, %v715
        %v718 = vsel %vm716, %v717, %v715
        %v719 = vclz %v718
        %v720 = vsub.s32 %v719, 2
        %vm721 = vcmp.gt.s32.totalorder 0, %v720
        %v722 = vsel %vm721, 0, %v720
        %v723 = vsub.s32 32, %v722
        %v724 = vshll.u32 %v715, %v722
        %v725 = vshrl.u32 %v707, %v723
        %v726 = vor.u32 %v724, %v725
        %v727 = vsub.s32 4294967266, %v722
        %v728 = vadd.s32 %v727, 127
        %v729 = vshll.u32 %v728, 23
        %v730 = vor.u32 4788187, %v729
        %v731 = vand.u32 2147483647, %v730
        %v733 = vcvt.s32.f32 %v726
        %v734 = vmul.f32 %v733, %v731
        %v735 = vxor.u32 %v734, 2147483648
        %v736 = vsel %vm615, %v735, %v734
        %v737 = vsub.s32 4, %v713
        %v738 = vsel %vm615, %v737, %v713
        %v739 = vsel %vm614, %v286, %v736
        %v740 = vsel %vm614, 0, %v738
        %v741 = vmul.f32 %v739, %v739
        %v742 = vmul.f32 %v741, -0.001358992
        %v743 = vadd.f32 %v742, 0.041655596
        %v744 = vmul.f32 %v741, %v743
        %v745 = vadd.f32 %v744, -0.4999988
        %v746 = vmul.f32 %v741, %v745
        %v747 = vadd.f32 1.0, %v746
        %v748 = vmul.f32 %v739, %v739
        %v749 = vmul.f32 %v748, -0.00019511016
        %v750 = vadd.f32 %v749, 0.008332121
        %v751 = vmul.f32 %v748, %v750
        %v752 = vadd.f32 %v751, -0.16666654
        %v753 = vmul.f32 %v748, %v752
        %v754 = vadd.f32 %v753, 1.0
        %v755 = vmul.f32 %v754, %v739
        %vm756 = vweird.f32 %v286
        %v757 = vadd.s32 %v740, 3
        %v758 = vand.u32 %v757, 3
        %vm759 = vcmp.lt.s32.totalorder %v758, 2
        %vm760 = vcmp.eq.s32.totalorder %v758, 0
        %v761 = vxor.u32 %v755, 2147483648
        %v762 = vsel %vm760, %v747, %v761
        %vm763 = vcmp.eq.s32.totalorder %v758, 2
        %v764 = vxor.u32 %v747, 2147483648
        %v765 = vsel %vm763, %v764, %v755
        %v766 = vsel %vm759, %v762, %v765
        %v767 = vsel %vm756, nan, %v766
        %v768 = vand.u32 2147483647, %v289
        %vm769 = vcmp.le.f32.partialorder %v768, 0.7853982
        %vm770 = vcmp.lt.s32.totalorder %v289, 0
        %v771 = vand.u32 %v289, 2139095040
        %v772 = vshrl.u32 %v771, 23
        %v773 = vsub.s32 %v772, 127
        %v774 = vand.u32 2147483647, %v289
        %v775 = vand.u32 %v774, 8388607
        %v776 = vor.u32 %v775, 8388608
        %v777 = vsub.s32 0, %v776
        %v778 = vadd.s32 %v773, 1
        %vm779 = vcmp.gt.s32.totalorder %v778, 0
        %v780 = vsel %vm779, %v778, 0
        %v781 = vshrl.u32 %v780, 5
        %v782 = vand.u32 %v780, 31
        %v783 = vsub.s32 32, %v782
        %v784 = vshrl.u32 683565275, %v783
        %v785 = vshll.u32 683565275, %v782
        %v786 = vshrl.u32 2475754826, %v783
        %v787 = vor.u32 %v785, %v786
        %v788 = vshll.u32 2475754826, %v782
        %v789 = vshrl.u32 2131351028, %v783
        %v790 = vor.u32 %v788, %v789
        %v791 = vshll.u32 2131351028, %v782
        %v792 = vshrl.u32 2102212464, %v783
        %v793 = vor.u32 %v791, %v792
        %v794 = vshll.u32 2102212464, %v782
        %v795 = vshrl.u32 920167782, %v783
        %v796 = vor.u32 %v794, %v795
        %v797 = vshll.u32 920167782, %v782
        %v798 = vshrl.u32 1326507024, %v783
        %v799 = vor.u32 %v797, %v798
        %vm800 = vcmp.lt.s32.totalorder %v781, 1
        %vm801 = vcmp.lt.s32.totalorder %v781, 2
        %vm802 = vcmp.lt.s32.totalorder %v781, 3
        %vm803 = vcmp.lt.s32.totalorder %v781, 4
        %v804 = vsel %vm800, %v784, %v787
        %v805 = vsel %vm803, %v793, 2102212464
        %v806 = vsel %vm802, %v790, %v805
        %v807 = vsel %vm801, %v804, %v806
        %v808 = vsel %vm800, %v787, %v790
        %v809 = vsel %vm803, %v796, 920167782
        %v810 = vsel %vm802, %v793, %v809
        %v811 = vsel %vm801, %v808, %v810
        %v812 = vsel %vm800, %v790, %v793
        %v813 = vsel %vm803, %v799, 1326507024
        %v814 = vsel %vm802, %v796, %v813
        %v815 = vsel %vm801, %v812, %v814
        %v816 = vshll.u32 %v776, 8
        %v817 = vand.u32 %v816, 65535
        %v818 = vshrl.u32 %v816, 16
        %v819 = vand.u32 %v815, 65535
        %v820 = vshrl.u32 %v815, 16
        %v821 = vmul.u32 %v817, %v819
        %v822 = vmul.u32 %v817, %v820
        %v823 = vmul.u32 %v818, %v819
        %v824 = vmul.u32 %v818, %v820
        %v825 = vshll.u32 %v822, 16
        %v826 = vshrl.u32 %v822, 16
        %v827 = vshll.u32 %v823, 16
        %v828 = vshrl.u32 %v823, 16
        %vm829 = vc.u32 %v821, %v825
        %v830 = vsel %vm829, 1, 0
        %v831 = vadd.s32 %v821, %v825
        %v832 = vadd.s32 %v824, %v830
        %vm833 = vc.u32 %v831, %v827
        %v834 = vsel %vm833, 1, 0
        %v835 = vadd.s32 %v831, %v827
        %v836 = vadd.s32 %v832, %v834
        %v837 = vadd.s32 %v836, %v826
        %v838 = vadd.s32 %v837, %v828
        %v839 = vand.u32 %v816, 65535
        %v840 = vshrl.u32 %v816, 16
        %v841 = vand.u32 %v811, 65535
        %v842 = vshrl.u32 %v811, 16
        %v843 = vmul.u32 %v839, %v841
        %v844 = vmul.u32 %v839, %v842
        %v845 = vmul.u32 %v840, %v841
        %v846 = vmul.u32 %v840, %v842
        %v847 = vshll.u32 %v844, 16
        %v848 = vshrl.u32 %v844, 16
        %v849 = vshll.u32 %v845, 16
        %v850 = vshrl.u32 %v845, 16
        %vm851 = vc.u32 %v843, %v847
        %v852 = vsel %vm851, 1, 0
        %v853 = vadd.s32 %v843, %v847
        %v854 = vadd.s32 %v846, %v852
        %vm855 = vc.u32 %v853, %v849
        %v856 = vsel %vm855, 1, 0
        %v857 = vadd.s32 %v853, %v849
        %v858 = vadd.s32 %v854, %v856
        %v859 = vadd.s32 %v858, %v848
        %v860 = vadd.s32 %v859, %v850
        %v861 = vmul.u32 %v816, %v807
        %v862 = vadd.s32 %v838, %v857
        %vm863 = vc.u32 %v838, %v857
        %v864 = vadd.s32 %v860, 1
        %v865 = vsel %vm863, %v864, %v860
        %v866 = vadd.s32 %v861, %v865
        %v867 = vadd.s32 %v866, 536870912
        %v868 = vshrl.u32 %v867, 30
        %v869 = vshll.u32 %v868, 30
        %v870 = vsub.s32 %v866, %v869
        %vm871 = vcmp.lt.s32.totalorder %v870, 0
        %v872 = vsub.s32 0, %v870
        %v873 = vsel %vm871, %v872, %v870
        %v874 = vclz %v873
        %v875 = vsub.s32 %v874, 2
        %vm876 = vcmp.gt.s32.totalorder 0, %v875
        %v877 = vsel %vm876, 0, %v875
        %v878 = vsub.s32 32, %v877
        %v879 = vshll.u32 %v870, %v877
        %v880 = vshrl.u32 %v862, %v878
        %v881 = vor.u32 %v879, %v880
        %v882 = vsub.s32 4294967266, %v877
        %v883 = vadd.s32 %v882, 127
        %v884 = vshll.u32 %v883, 23
        %v885 = vor.u32 4788187, %v884
        %v886 = vand.u32 2147483647, %v885
        %v888 = vcvt.s32.f32 %v881
        %v889 = vmul.f32 %v888, %v886
        %v890 = vxor.u32 %v889, 2147483648
        %v891 = vsel %vm770, %v890, %v889
        %v892 = vsub.s32 4, %v868
        %v893 = vsel %vm770, %v892, %v868
        %v894 = vsel %vm769, %v289, %v891
        %v895 = vsel %vm769, 0, %v893
        %v896 = vmul.f32 %v894, %v894
        %v897 = vmul.f32 %v896, -0.001358992
        %v898 = vadd.f32 %v897, 0.041655596
        %v899 = vmul.f32 %v896, %v898
        %v900 = vadd.f32 %v899, -0.4999988
        %v901 = vmul.f32 %v896, %v900
        %v902 = vadd.f32 1.0, %v901
        %v903 = vmul.f32 %v894, %v894
        %v904 = vmul.f32 %v903, -0.00019511016
        %v905 = vadd.f32 %v904, 0.008332121
        %v906 = vmul.f32 %v903, %v905
        %v907 = vadd.f32 %v906, -0.16666654
        %v908 = vmul.f32 %v903, %v907
        %v909 = vadd.f32 %v908, 1.0
        %v910 = vmul.f32 %v909, %v894
        %vm911 = vweird.f32 %v289
        %v912 = vadd.s32 %v895, 3
        %v913 = vand.u32 %v912, 3
        %vm914 = vcmp.lt.s32.totalorder %v913, 2
        %vm915 = vcmp.eq.s32.totalorder %v913, 0
        %v916 = vxor.u32 %v910, 2147483648
        %v917 = vsel %vm915, %v902, %v916
        %vm918 = vcmp.eq.s32.totalorder %v913, 2
        %v919 = vxor.u32 %v902, 2147483648
        %v920 = vsel %vm918, %v919, %v910
        %v921 = vsel %vm914, %v917, %v920
        %v922 = vsel %vm911, nan, %v921
        %v923 = vand.u32 2147483647, %v292
        %vm924 = vcmp.le.f32.partialorder %v923, 0.7853982
        %vm925 = vcmp.lt.s32.totalorder %v292, 0
        %v926 = vand.u32 %v292, 2139095040
        %v927 = vshrl.u32 %v926, 23
        %v928 = vsub.s32 %v927, 127
        %v929 = vand.u32 2147483647, %v292
        %v930 = vand.u32 %v929, 8388607
        %v931 = vor.u32 %v930, 8388608
        %v932 = vsub.s32 0, %v931
        %v933 = vadd.s32 %v928, 1
        %vm934 = vcmp.gt.s32.totalorder %v933, 0
        %v935 = vsel %vm934, %v933, 0
        %v936 = vshrl.u32 %v935, 5
        %v937 = vand.u32 %v935, 31
        %v938 = vsub.s32 32, %v937
        %v939 = vshrl.u32 683565275, %v938
        %v940 = vshll.u32 683565275, %v937
        %v941 = vshrl.u32 2475754826, %v938
        %v942 = vor.u32 %v940, %v941
        %v943 = vshll.u32 2475754826, %v937
        %v944 = vshrl.u32 2131351028, %v938
        %v945 = vor.u32 %v943, %v944
        %v946 = vshll.u32 2131351028, %v937
        %v947 = vshrl.u32 2102212464, %v938
        %v948 = vor.u32 %v946, %v947
        %v949 = vshll.u32 2102212464, %v937
        %v950 = vshrl.u32 920167782, %v938
        %v951 = vor.u32 %v949, %v950
        %v952 = vshll.u32 920167782, %v937
        %v953 = vshrl.u32 1326507024, %v938
        %v954 = vor.u32 %v952, %v953
        %vm955 = vcmp.lt.s32.totalorder %v936, 1
        %vm956 = vcmp.lt.s32.totalorder %v936, 2
        %vm957 = vcmp.lt.s32.totalorder %v936, 3
        %vm958 = vcmp.lt.s32.totalorder %v936, 4
        %v959 = vsel %vm955, %v939, %v942
        %v960 = vsel %vm958, %v948, 2102212464
        %v961 = vsel %vm957, %v945, %v960
        %v962 = vsel %vm956, %v959, %v961
        %v963 = vsel %vm955, %v942, %v945
        %v964 = vsel %vm958, %v951, 920167782
        %v965 = vsel %vm957, %v948, %v964
        %v966 = vsel %vm956, %v963, %v965
        %v967 = vsel %vm955, %v945, %v948
        %v968 = vsel %vm958, %v954, 1326507024
        %v969 = vsel %vm957, %v951, %v968
        %v970 = vsel %vm956, %v967, %v969
        %v971 = vshll.u32 %v931, 8
        %v972 = vand.u32 %v971, 65535
        %v973 = vshrl.u32 %v971, 16
        %v974 = vand.u32 %v970, 65535
        %v975 = vshrl.u32 %v970, 16
        %v976 = vmul.u32 %v972, %v974
        %v977 = vmul.u32 %v972, %v975
        %v978 = vmul.u32 %v973, %v974
        %v979 = vmul.u32 %v973, %v975
        %v980 = vshll.u32 %v977, 16
        %v981 = vshrl.u32 %v977, 16
        %v982 = vshll.u32 %v978, 16
        %v983 = vshrl.u32 %v978, 16
        %vm984 = vc.u32 %v976, %v980
        %v985 = vsel %vm984, 1, 0
        %v986 = vadd.s32 %v976, %v980
        %v987 = vadd.s32 %v979, %v985
        %vm988 = vc.u32 %v986, %v982
        %v989 = vsel %vm988, 1, 0
        %v990 = vadd.s32 %v986, %v982
        %v991 = vadd.s32 %v987, %v989
        %v992 = vadd.s32 %v991, %v981
        %v993 = vadd.s32 %v992, %v983
        %v994 = vand.u32 %v971, 65535
        %v995 = vshrl.u32 %v971, 16
        %v996 = vand.u32 %v966, 65535
        %v997 = vshrl.u32 %v966, 16
        %v998 = vmul.u32 %v994, %v996
        %v999 = vmul.u32 %v994, %v997
        %v1000 = vmul.u32 %v995, %v996
        %v1001 = vmul.u32 %v995, %v997
        %v1002 = vshll.u32 %v999, 16
        %v1003 = vshrl.u32 %v999, 16
        %v1004 = vshll.u32 %v1000, 16
        %v1005 = vshrl.u32 %v1000, 16
        %vm1006 = vc.u32 %v998, %v1002
        %v1007 = vsel %vm1006, 1, 0
        %v1008 = vadd.s32 %v998, %v1002
        %v1009 = vadd.s32 %v1001, %v1007
        %vm1010 = vc.u32 %v1008, %v1004
        %v1011 = vsel %vm1010, 1, 0
        %v1012 = vadd.s32 %v1008, %v1004
        %v1013 = vadd.s32 %v1009, %v1011
        %v1014 = vadd.s32 %v1013, %v1003
        %v1015 = vadd.s32 %v1014, %v1005
        %v1016 = vmul.u32 %v971, %v962
        %v1017 = vadd.s32 %v993, %v1012
        %vm1018 = vc.u32 %v993, %v1012
        %v1019 = vadd.s32 %v1015, 1
        %v1020 = vsel %vm1018, %v1019, %v1015
        %v1021 = vadd.s32 %v1016, %v1020
        %v1022 = vadd.s32 %v1021, 536870912
        %v1023 = vshrl.u32 %v1022, 30
        %v1024 = vshll.u32 %v1023, 30
        %v1025 = vsub.s32 %v1021, %v1024
        %vm1026 = vcmp.lt.s32.totalorder %v1025, 0
        %v1027 = vsub.s32 0, %v1025
        %v1028 = vsel %vm1026, %v1027, %v1025
        %v1029 = vclz %v1028
        %v1030 = vsub.s32 %v1029, 2
        %vm1031 = vcmp.gt.s32.totalorder 0, %v1030
        %v1032 = vsel %vm1031, 0, %v1030
        %v1033 = vsub.s32 32, %v1032
        %v1034 = vshll.u32 %v1025, %v1032
        %v1035 = vshrl.u32 %v1017, %v1033
        %v1036 = vor.u32 %v1034, %v1035
        %v1037 = vsub.s32 4294967266, %v1032
        %v1038 = vadd.s32 %v1037, 127
        %v1039 = vshll.u32 %v1038, 23
        %v1040 = vor.u32 4788187, %v1039
        %v1041 = vand.u32 2147483647, %v1040
        %v1043 = vcvt.s32.f32 %v1036
        %v1044 = vmul.f32 %v1043, %v1041
        %v1045 = vxor.u32 %v1044, 2147483648
        %v1046 = vsel %vm925, %v1045, %v1044
        %v1047 = vsub.s32 4, %v1023
        %v1048 = vsel %vm925, %v1047, %v1023
        %v1049 = vsel %vm924, %v292, %v1046
        %v1050 = vsel %vm924, 0, %v1048
        %v1051 = vmul.f32 %v1049, %v1049
        %v1052 = vmul.f32 %v1051, -0.001358992
        %v1053 = vadd.f32 %v1052, 0.041655596
        %v1054 = vmul.f32 %v1051, %v1053
        %v1055 = vadd.f32 %v1054, -0.4999988
        %v1056 = vmul.f32 %v1051, %v1055
        %v1057 = vadd.f32 1.0, %v1056
        %v1058 = vmul.f32 %v1049, %v1049
        %v1059 = vmul.f32 %v1058, -0.00019511016
        %v1060 = vadd.f32 %v1059, 0.008332121
        %v1061 = vmul.f32 %v1058, %v1060
        %v1062 = vadd.f32 %v1061, -0.16666654
        %v1063 = vmul.f32 %v1058, %v1062
        %v1064 = vadd.f32 %v1063, 1.0
        %v1065 = vmul.f32 %v1064, %v1049
        %vm1066 = vweird.f32 %v292
        %v1067 = vadd.s32 %v1050, 3
        %v1068 = vand.u32 %v1067, 3
        %vm1069 = vcmp.lt.s32.totalorder %v1068, 2
        %vm1070 = vcmp.eq.s32.totalorder %v1068, 0
        %v1071 = vxor.u32 %v1065, 2147483648
        %v1072 = vsel %vm1070, %v1057, %v1071
        %vm1073 = vcmp.eq.s32.totalorder %v1068, 2
        %v1074 = vxor.u32 %v1057, 2147483648
        %v1075 = vsel %vm1073, %v1074, %v1065
        %v1076 = vsel %vm1069, %v1072, %v1075
        %v1077 = vsel %vm1066, nan, %v1076
        %v1078 = vand.u32 2147483647, %v295
        %vm1079 = vcmp.le.f32.partialorder %v1078, 0.7853982
        %vm1080 = vcmp.lt.s32.totalorder %v295, 0
        %v1081 = vand.u32 %v295, 2139095040
        %v1082 = vshrl.u32 %v1081, 23
        %v1083 = vsub.s32 %v1082, 127
        %v1084 = vand.u32 2147483647, %v295
        %v1085 = vand.u32 %v1084, 8388607
        %v1086 = vor.u32 %v1085, 8388608
        %v1087 = vsub.s32 0, %v1086
        %v1088 = vadd.s32 %v1083, 1
        %vm1089 = vcmp.gt.s32.totalorder %v1088, 0
        %v1090 = vsel %vm1089, %v1088, 0
        %v1091 = vshrl.u32 %v1090, 5
        %v1092 = vand.u32 %v1090, 31
        %v1093 = vsub.s32 32, %v1092
        %v1094 = vshrl.u32 683565275, %v1093
        %v1095 = vshll.u32 683565275, %v1092
        %v1096 = vshrl.u32 2475754826, %v1093
        %v1097 = vor.u32 %v1095, %v1096
        %v1098 = vshll.u32 2475754826, %v1092
        %v1099 = vshrl.u32 2131351028, %v1093
        %v1100 = vor.u32 %v1098, %v1099
        %v1101 = vshll.u32 2131351028, %v1092
        %v1102 = vshrl.u32 2102212464, %v1093
        %v1103 = vor.u32 %v1101, %v1102
        %v1104 = vshll.u32 2102212464, %v1092
        %v1105 = vshrl.u32 920167782, %v1093
        %v1106 = vor.u32 %v1104, %v1105
        %v1107 = vshll.u32 920167782, %v1092
        %v1108 = vshrl.u32 1326507024, %v1093
        %v1109 = vor.u32 %v1107, %v1108
        %vm1110 = vcmp.lt.s32.totalorder %v1091, 1
        %vm1111 = vcmp.lt.s32.totalorder %v1091, 2
        %vm1112 = vcmp.lt.s32.totalorder %v1091, 3
        %vm1113 = vcmp.lt.s32.totalorder %v1091, 4
        %v1114 = vsel %vm1110, %v1094, %v1097
        %v1115 = vsel %vm1113, %v1103, 2102212464
        %v1116 = vsel %vm1112, %v1100, %v1115
        %v1117 = vsel %vm1111, %v1114, %v1116
        %v1118 = vsel %vm1110, %v1097, %v1100
        %v1119 = vsel %vm1113, %v1106, 920167782
        %v1120 = vsel %vm1112, %v1103, %v1119
        %v1121 = vsel %vm1111, %v1118, %v1120
        %v1122 = vsel %vm1110, %v1100, %v1103
        %v1123 = vsel %vm1113, %v1109, 1326507024
        %v1124 = vsel %vm1112, %v1106, %v1123
        %v1125 = vsel %vm1111, %v1122, %v1124
        %v1126 = vshll.u32 %v1086, 8
        %v1127 = vand.u32 %v1126, 65535
        %v1128 = vshrl.u32 %v1126, 16
        %v1129 = vand.u32 %v1125, 65535
        %v1130 = vshrl.u32 %v1125, 16
        %v1131 = vmul.u32 %v1127, %v1129
        %v1132 = vmul.u32 %v1127, %v1130
        %v1133 = vmul.u32 %v1128, %v1129
        %v1134 = vmul.u32 %v1128, %v1130
        %v1135 = vshll.u32 %v1132, 16
        %v1136 = vshrl.u32 %v1132, 16
        %v1137 = vshll.u32 %v1133, 16
        %v1138 = vshrl.u32 %v1133, 16
        %vm1139 = vc.u32 %v1131, %v1135
        %v1140 = vsel %vm1139, 1, 0
        %v1141 = vadd.s32 %v1131, %v1135
        %v1142 = vadd.s32 %v1134, %v1140
        %vm1143 = vc.u32 %v1141, %v1137
        %v1144 = vsel %vm1143, 1, 0
        %v1145 = vadd.s32 %v1141, %v1137
        %v1146 = vadd.s32 %v1142, %v1144
        %v1147 = vadd.s32 %v1146, %v1136
        %v1148 = vadd.s32 %v1147, %v1138
        %v1149 = vand.u32 %v1126, 65535
        %v1150 = vshrl.u32 %v1126, 16
        %v1151 = vand.u32 %v1121, 65535
        %v1152 = vshrl.u32 %v1121, 16
        %v1153 = vmul.u32 %v1149, %v1151
        %v1154 = vmul.u32 %v1149, %v1152
        %v1155 = vmul.u32 %v1150, %v1151
        %v1156 = vmul.u32 %v1150, %v1152
        %v1157 = vshll.u32 %v1154, 16
        %v1158 = vshrl.u32 %v1154, 16
        %v1159 = vshll.u32 %v1155, 16
        %v1160 = vshrl.u32 %v1155, 16
        %vm1161 = vc.u32 %v1153, %v1157
        %v1162 = vsel %vm1161, 1, 0
        %v1163 = vadd.s32 %v1153, %v1157
        %v1164 = vadd.s32 %v1156, %v1162
        %vm1165 = vc.u32 %v1163, %v1159
        %v1166 = vsel %vm1165, 1, 0
        %v1167 = vadd.s32 %v1163, %v1159
        %v1168 = vadd.s32 %v1164, %v1166
        %v1169 = vadd.s32 %v1168, %v1158
        %v1170 = vadd.s32 %v1169, %v1160
        %v1171 = vmul.u32 %v1126, %v1117
        %v1172 = vadd.s32 %v1148, %v1167
        %vm1173 = vc.u32 %v1148, %v1167
        %v1174 = vadd.s32 %v1170, 1
        %v1175 = vsel %vm1173, %v1174, %v1170
        %v1176 = vadd.s32 %v1171, %v1175
        %v1177 = vadd.s32 %v1176, 536870912
        %v1178 = vshrl.u32 %v1177, 30
        %v1179 = vshll.u32 %v1178, 30
        %v1180 = vsub.s32 %v1176, %v1179
        %vm1181 = vcmp.lt.s32.totalorder %v1180, 0
        %v1182 = vsub.s32 0, %v1180
        %v1183 = vsel %vm1181, %v1182, %v1180
        %v1184 = vclz %v1183
        %v1185 = vsub.s32 %v1184, 2
        %vm1186 = vcmp.gt.s32.totalorder 0, %v1185
        %v1187 = vsel %vm1186, 0, %v1185
        %v1188 = vsub.s32 32, %v1187
        %v1189 = vshll.u32 %v1180, %v1187
        %v1190 = vshrl.u32 %v1172, %v1188
        %v1191 = vor.u32 %v1189, %v1190
        %v1192 = vsub.s32 4294967266, %v1187
        %v1193 = vadd.s32 %v1192, 127
        %v1194 = vshll.u32 %v1193, 23
        %v1195 = vor.u32 4788187, %v1194
        %v1196 = vand.u32 2147483647, %v1195
        %v1198 = vcvt.s32.f32 %v1191
        %v1199 = vmul.f32 %v1198, %v1196
        %v1200 = vxor.u32 %v1199, 2147483648
        %v1201 = vsel %vm1080, %v1200, %v1199
        %v1202 = vsub.s32 4, %v1178
        %v1203 = vsel %vm1080, %v1202, %v1178
        %v1204 = vsel %vm1079, %v295, %v1201
        %v1205 = vsel %vm1079, 0, %v1203
        %v1206 = vmul.f32 %v1204, %v1204
        %v1207 = vmul.f32 %v1206, -0.001358992
        %v1208 = vadd.f32 %v1207, 0.041655596
        %v1209 = vmul.f32 %v1206, %v1208
        %v1210 = vadd.f32 %v1209, -0.4999988
        %v1211 = vmul.f32 %v1206, %v1210
        %v1212 = vadd.f32 1.0, %v1211
        %v1213 = vmul.f32 %v1204, %v1204
        %v1214 = vmul.f32 %v1213, -0.00019511016
        %v1215 = vadd.f32 %v1214, 0.008332121
        %v1216 = vmul.f32 %v1213, %v1215
        %v1217 = vadd.f32 %v1216, -0.16666654
        %v1218 = vmul.f32 %v1213, %v1217
        %v1219 = vadd.f32 %v1218, 1.0
        %v1220 = vmul.f32 %v1219, %v1204
        %vm1221 = vweird.f32 %v295
        %v1222 = vadd.s32 %v1205, 3
        %v1223 = vand.u32 %v1222, 3
        %vm1224 = vcmp.lt.s32.totalorder %v1223, 2
        %vm1225 = vcmp.eq.s32.totalorder %v1223, 0
        %v1226 = vxor.u32 %v1220, 2147483648
        %v1227 = vsel %vm1225, %v1212, %v1226
        %vm1228 = vcmp.eq.s32.totalorder %v1223, 2
        %v1229 = vxor.u32 %v1212, 2147483648
        %v1230 = vsel %vm1228, %v1229, %v1220
        %v1231 = vsel %vm1224, %v1227, %v1230
        %v1232 = vsel %vm1221, nan, %v1231
        %v1233 = vand.u32 2147483647, %v298
        %vm1234 = vcmp.le.f32.partialorder %v1233, 0.7853982
        %vm1235 = vcmp.lt.s32.totalorder %v298, 0
        %v1236 = vand.u32 %v298, 2139095040
        %v1237 = vshrl.u32 %v1236, 23
        %v1238 = vsub.s32 %v1237, 127
        %v1239 = vand.u32 2147483647, %v298
        %v1240 = vand.u32 %v1239, 8388607
        %v1241 = vor.u32 %v1240, 8388608
        %v1242 = vsub.s32 0, %v1241
        %v1243 = vadd.s32 %v1238, 1
        %vm1244 = vcmp.gt.s32.totalorder %v1243, 0
        %v1245 = vsel %vm1244, %v1243, 0
        %v1246 = vshrl.u32 %v1245, 5
        %v1247 = vand.u32 %v1245, 31
        %v1248 = vsub.s32 32, %v1247
        %v1249 = vshrl.u32 683565275, %v1248
        %v1250 = vshll.u32 683565275, %v1247
        %v1251 = vshrl.u32 2475754826, %v1248
        %v1252 = vor.u32 %v1250, %v1251
        %v1253 = vshll.u32 2475754826, %v1247
        %v1254 = vshrl.u32 2131351028, %v1248
        %v1255 = vor.u32 %v1253, %v1254
        %v1256 = vshll.u32 2131351028, %v1247
        %v1257 = vshrl.u32 2102212464, %v1248
        %v1258 = vor.u32 %v1256, %v1257
        %v1259 = vshll.u32 2102212464, %v1247
        %v1260 = vshrl.u32 920167782, %v1248
        %v1261 = vor.u32 %v1259, %v1260
        %v1262 = vshll.u32 920167782, %v1247
        %v1263 = vshrl.u32 1326507024, %v1248
        %v1264 = vor.u32 %v1262, %v1263
        %vm1265 = vcmp.lt.s32.totalorder %v1246, 1
        %vm1266 = vcmp.lt.s32.totalorder %v1246, 2
        %vm1267 = vcmp.lt.s32.totalorder %v1246, 3
        %vm1268 = vcmp.lt.s32.totalorder %v1246, 4
        %v1269 = vsel %vm1265, %v1249, %v1252
        %v1270 = vsel %vm1268, %v1258, 2102212464
        %v1271 = vsel %vm1267, %v1255, %v1270
        %v1272 = vsel %vm1266, %v1269, %v1271
        %v1273 = vsel %vm1265, %v1252, %v1255
        %v1274 = vsel %vm1268, %v1261, 920167782
        %v1275 = vsel %vm1267, %v1258, %v1274
        %v1276 = vsel %vm1266, %v1273, %v1275
        %v1277 = vsel %vm1265, %v1255, %v1258
        %v1278 = vsel %vm1268, %v1264, 1326507024
        %v1279 = vsel %vm1267, %v1261, %v1278
        %v1280 = vsel %vm1266, %v1277, %v1279
        %v1281 = vshll.u32 %v1241, 8
        %v1282 = vand.u32 %v1281, 65535
        %v1283 = vshrl.u32 %v1281, 16
        %v1284 = vand.u32 %v1280, 65535
        %v1285 = vshrl.u32 %v1280, 16
        %v1286 = vmul.u32 %v1282, %v1284
        %v1287 = vmul.u32 %v1282, %v1285
        %v1288 = vmul.u32 %v1283, %v1284
        %v1289 = vmul.u32 %v1283, %v1285
        %v1290 = vshll.u32 %v1287, 16
        %v1291 = vshrl.u32 %v1287, 16
        %v1292 = vshll.u32 %v1288, 16
        %v1293 = vshrl.u32 %v1288, 16
        %vm1294 = vc.u32 %v1286, %v1290
        %v1295 = vsel %vm1294, 1, 0
        %v1296 = vadd.s32 %v1286, %v1290
        %v1297 = vadd.s32 %v1289, %v1295
        %vm1298 = vc.u32 %v1296, %v1292
        %v1299 = vsel %vm1298, 1, 0
        %v1300 = vadd.s32 %v1296, %v1292
        %v1301 = vadd.s32 %v1297, %v1299
        %v1302 = vadd.s32 %v1301, %v1291
        %v1303 = vadd.s32 %v1302, %v1293
        %v1304 = vand.u32 %v1281, 65535
        %v1305 = vshrl.u32 %v1281, 16
        %v1306 = vand.u32 %v1276, 65535
        %v1307 = vshrl.u32 %v1276, 16
        %v1308 = vmul.u32 %v1304, %v1306
        %v1309 = vmul.u32 %v1304, %v1307
        %v1310 = vmul.u32 %v1305, %v1306
        %v1311 = vmul.u32 %v1305, %v1307
        %v1312 = vshll.u32 %v1309, 16
        %v1313 = vshrl.u32 %v1309, 16
        %v1314 = vshll.u32 %v1310, 16
        %v1315 = vshrl.u32 %v1310, 16
        %vm1316 = vc.u32 %v1308, %v1312
        %v1317 = vsel %vm1316, 1, 0
        %v1318 = vadd.s32 %v1308, %v1312
        %v1319 = vadd.s32 %v1311, %v1317
        %vm1320 = vc.u32 %v1318, %v1314
        %v1321 = vsel %vm1320, 1, 0
        %v1322 = vadd.s32 %v1318, %v1314
        %v1323 = vadd.s32 %v1319, %v1321
        %v1324 = vadd.s32 %v1323, %v1313
        %v1325 = vadd.s32 %v1324, %v1315
        %v1326 = vmul.u32 %v1281, %v1272
        %v1327 = vadd.s32 %v1303, %v1322
        %vm1328 = vc.u32 %v1303, %v1322
        %v1329 = vadd.s32 %v1325, 1
        %v1330 = vsel %vm1328, %v1329, %v1325
        %v1331 = vadd.s32 %v1326, %v1330
        %v1332 = vadd.s32 %v1331, 536870912
        %v1333 = vshrl.u32 %v1332, 30
        %v1334 = vshll.u32 %v1333, 30
        %v1335 = vsub.s32 %v1331, %v1334
        %vm1336 = vcmp.lt.s32.totalorder %v1335, 0
        %v1337 = vsub.s32 0, %v1335
        %v1338 = vsel %vm1336, %v1337, %v1335
        %v1339 = vclz %v1338
        %v1340 = vsub.s32 %v1339, 2
        %vm1341 = vcmp.gt.s32.totalorder 0, %v1340
        %v1342 = vsel %vm1341, 0, %v1340
        %v1343 = vsub.s32 32, %v1342
        %v1344 = vshll.u32 %v1335, %v1342
        %v1345 = vshrl.u32 %v1327, %v1343
        %v1346 = vor.u32 %v1344, %v1345
        %v1347 = vsub.s32 4294967266, %v1342
        %v1348 = vadd.s32 %v1347, 127
        %v1349 = vshll.u32 %v1348, 23
        %v1350 = vor.u32 4788187, %v1349
        %v1351 = vand.u32 2147483647, %v1350
        %v1353 = vcvt.s32.f32 %v1346
        %v1354 = vmul.f32 %v1353, %v1351
        %v1355 = vxor.u32 %v1354, 2147483648
        %v1356 = vsel %vm1235, %v1355, %v1354
        %v1357 = vsub.s32 4, %v1333
        %v1358 = vsel %vm1235, %v1357, %v1333
        %v1359 = vsel %vm1234, %v298, %v1356
        %v1360 = vsel %vm1234, 0, %v1358
        %v1361 = vmul.f32 %v1359, %v1359
        %v1362 = vmul.f32 %v1361, -0.001358992
        %v1363 = vadd.f32 %v1362, 0.041655596
        %v1364 = vmul.f32 %v1361, %v1363
        %v1365 = vadd.f32 %v1364, -0.4999988
        %v1366 = vmul.f32 %v1361, %v1365
        %v1367 = vadd.f32 1.0, %v1366
        %v1368 = vmul.f32 %v1359, %v1359
        %v1369 = vmul.f32 %v1368, -0.00019511016
        %v1370 = vadd.f32 %v1369, 0.008332121
        %v1371 = vmul.f32 %v1368, %v1370
        %v1372 = vadd.f32 %v1371, -0.16666654
        %v1373 = vmul.f32 %v1368, %v1372
        %v1374 = vadd.f32 %v1373, 1.0
        %v1375 = vmul.f32 %v1374, %v1359
        %vm1376 = vweird.f32 %v298
        %v1377 = vadd.s32 %v1360, 3
        %v1378 = vand.u32 %v1377, 3
        %vm1379 = vcmp.lt.s32.totalorder %v1378, 2
        %vm1380 = vcmp.eq.s32.totalorder %v1378, 0
        %v1381 = vxor.u32 %v1375, 2147483648
        %v1382 = vsel %vm1380, %v1367, %v1381
        %vm1383 = vcmp.eq.s32.totalorder %v1378, 2
        %v1384 = vxor.u32 %v1367, 2147483648
        %v1385 = vsel %vm1383, %v1384, %v1375
        %v1386 = vsel %vm1379, %v1382, %v1385
        %v1387 = vsel %vm1376, nan, %v1386
        %v1388 = vand.u32 2147483647, %v301
        %vm1389 = vcmp.le.f32.partialorder %v1388, 0.7853982
        %vm1390 = vcmp.lt.s32.totalorder %v301, 0
        %v1391 = vand.u32 %v301, 2139095040
        %v1392 = vshrl.u32 %v1391, 23
        %v1393 = vsub.s32 %v1392, 127
        %v1394 = vand.u32 2147483647, %v301
        %v1395 = vand.u32 %v1394, 8388607
        %v1396 = vor.u32 %v1395, 8388608
        %v1397 = vsub.s32 0, %v1396
        %v1398 = vadd.s32 %v1393, 1
        %vm1399 = vcmp.gt.s32.totalorder %v1398, 0
        %v1400 = vsel %vm1399, %v1398, 0
        %v1401 = vshrl.u32 %v1400, 5
        %v1402 = vand.u32 %v1400, 31
        %v1403 = vsub.s32 32, %v1402
        %v1404 = vshrl.u32 683565275, %v1403
        %v1405 = vshll.u32 683565275, %v1402
        %v1406 = vshrl.u32 2475754826, %v1403
        %v1407 = vor.u32 %v1405, %v1406
        %v1408 = vshll.u32 2475754826, %v1402
        %v1409 = vshrl.u32 2131351028, %v1403
        %v1410 = vor.u32 %v1408, %v1409
        %v1411 = vshll.u32 2131351028, %v1402
        %v1412 = vshrl.u32 2102212464, %v1403
        %v1413 = vor.u32 %v1411, %v1412
        %v1414 = vshll.u32 2102212464, %v1402
        %v1415 = vshrl.u32 920167782, %v1403
        %v1416 = vor.u32 %v1414, %v1415
        %v1417 = vshll.u32 920167782, %v1402
        %v1418 = vshrl.u32 1326507024, %v1403
        %v1419 = vor.u32 %v1417, %v1418
        %vm1420 = vcmp.lt.s32.totalorder %v1401, 1
        %vm1421 = vcmp.lt.s32.totalorder %v1401, 2
        %vm1422 = vcmp.lt.s32.totalorder %v1401, 3
        %vm1423 = vcmp.lt.s32.totalorder %v1401, 4
        %v1424 = vsel %vm1420, %v1404, %v1407
        %v1425 = vsel %vm1423, %v1413, 2102212464
        %v1426 = vsel %vm1422, %v1410, %v1425
        %v1427 = vsel %vm1421, %v1424, %v1426
        %v1428 = vsel %vm1420, %v1407, %v1410
        %v1429 = vsel %vm1423, %v1416, 920167782
        %v1430 = vsel %vm1422, %v1413, %v1429
        %v1431 = vsel %vm1421, %v1428, %v1430
        %v1432 = vsel %vm1420, %v1410, %v1413
        %v1433 = vsel %vm1423, %v1419, 1326507024
        %v1434 = vsel %vm1422, %v1416, %v1433
        %v1435 = vsel %vm1421, %v1432, %v1434
        %v1436 = vshll.u32 %v1396, 8
        %v1437 = vand.u32 %v1436, 65535
        %v1438 = vshrl.u32 %v1436, 16
        %v1439 = vand.u32 %v1435, 65535
        %v1440 = vshrl.u32 %v1435, 16
        %v1441 = vmul.u32 %v1437, %v1439
        %v1442 = vmul.u32 %v1437, %v1440
        %v1443 = vmul.u32 %v1438, %v1439
        %v1444 = vmul.u32 %v1438, %v1440
        %v1445 = vshll.u32 %v1442, 16
        %v1446 = vshrl.u32 %v1442, 16
        %v1447 = vshll.u32 %v1443, 16
        %v1448 = vshrl.u32 %v1443, 16
        %vm1449 = vc.u32 %v1441, %v1445
        %v1450 = vsel %vm1449, 1, 0
        %v1451 = vadd.s32 %v1441, %v1445
        %v1452 = vadd.s32 %v1444, %v1450
        %vm1453 = vc.u32 %v1451, %v1447
        %v1454 = vsel %vm1453, 1, 0
        %v1455 = vadd.s32 %v1451, %v1447
        %v1456 = vadd.s32 %v1452, %v1454
        %v1457 = vadd.s32 %v1456, %v1446
        %v1458 = vadd.s32 %v1457, %v1448
        %v1459 = vand.u32 %v1436, 65535
        %v1460 = vshrl.u32 %v1436, 16
        %v1461 = vand.u32 %v1431, 65535
        %v1462 = vshrl.u32 %v1431, 16
        %v1463 = vmul.u32 %v1459, %v1461
        %v1464 = vmul.u32 %v1459, %v1462
        %v1465 = vmul.u32 %v1460, %v1461
        %v1466 = vmul.u32 %v1460, %v1462
        %v1467 = vshll.u32 %v1464, 16
        %v1468 = vshrl.u32 %v1464, 16
        %v1469 = vshll.u32 %v1465, 16
        %v1470 = vshrl.u32 %v1465, 16
        %vm1471 = vc.u32 %v1463, %v1467
        %v1472 = vsel %vm1471, 1, 0
        %v1473 = vadd.s32 %v1463, %v1467
        %v1474 = vadd.s32 %v1466, %v1472
        %vm1475 = vc.u32 %v1473, %v1469
        %v1476 = vsel %vm1475, 1, 0
        %v1477 = vadd.s32 %v1473, %v1469
        %v1478 = vadd.s32 %v1474, %v1476
        %v1479 = vadd.s32 %v1478, %v1468
        %v1480 = vadd.s32 %v1479, %v1470
        %v1481 = vmul.u32 %v1436, %v1427
        %v1482 = vadd.s32 %v1458, %v1477
        %vm1483 = vc.u32 %v1458, %v1477
        %v1484 = vadd.s32 %v1480, 1
        %v1485 = vsel %vm1483, %v1484, %v1480
        %v1486 = vadd.s32 %v1481, %v1485
        %v1487 = vadd.s32 %v1486, 536870912
        %v1488 = vshrl.u32 %v1487, 30
        %v1489 = vshll.u32 %v1488, 30
        %v1490 = vsub.s32 %v1486, %v1489
        %vm1491 = vcmp.lt.s32.totalorder %v1490, 0
        %v1492 = vsub.s32 0, %v1490
        %v1493 = vsel %vm1491, %v1492, %v1490
        %v1494 = vclz %v1493
        %v1495 = vsub.s32 %v1494, 2
        %vm1496 = vcmp.gt.s32.totalorder 0, %v1495
        %v1497 = vsel %vm1496, 0, %v1495
        %v1498 = vsub.s32 32, %v1497
        %v1499 = vshll.u32 %v1490, %v1497
        %v1500 = vshrl.u32 %v1482, %v1498
        %v1501 = vor.u32 %v1499, %v1500
        %v1502 = vsub.s32 4294967266, %v1497
        %v1503 = vadd.s32 %v1502, 127
        %v1504 = vshll.u32 %v1503, 23
        %v1505 = vor.u32 4788187, %v1504
        %v1506 = vand.u32 2147483647, %v1505
        %v1508 = vcvt.s32.f32 %v1501
        %v1509 = vmul.f32 %v1508, %v1506
        %v1510 = vxor.u32 %v1509, 2147483648
        %v1511 = vsel %vm1390, %v1510, %v1509
        %v1512 = vsub.s32 4, %v1488
        %v1513 = vsel %vm1390, %v1512, %v1488
        %v1514 = vsel %vm1389, %v301, %v1511
        %v1515 = vsel %vm1389, 0, %v1513
        %v1516 = vmul.f32 %v1514, %v1514
        %v1517 = vmul.f32 %v1516, -0.001358992
        %v1518 = vadd.f32 %v1517, 0.041655596
        %v1519 = vmul.f32 %v1516, %v1518
        %v1520 = vadd.f32 %v1519, -0.4999988
        %v1521 = vmul.f32 %v1516, %v1520
        %v1522 = vadd.f32 1.0, %v1521
        %v1523 = vmul.f32 %v1514, %v1514
        %v1524 = vmul.f32 %v1523, -0.00019511016
        %v1525 = vadd.f32 %v1524, 0.008332121
        %v1526 = vmul.f32 %v1523, %v1525
        %v1527 = vadd.f32 %v1526, -0.16666654
        %v1528 = vmul.f32 %v1523, %v1527
        %v1529 = vadd.f32 %v1528, 1.0
        %v1530 = vmul.f32 %v1529, %v1514
        %vm1531 = vweird.f32 %v301
        %v1532 = vadd.s32 %v1515, 3
        %v1533 = vand.u32 %v1532, 3
        %vm1534 = vcmp.lt.s32.totalorder %v1533, 2
        %vm1535 = vcmp.eq.s32.totalorder %v1533, 0
        %v1536 = vxor.u32 %v1530, 2147483648
        %v1537 = vsel %vm1535, %v1522, %v1536
        %vm1538 = vcmp.eq.s32.totalorder %v1533, 2
        %v1539 = vxor.u32 %v1522, 2147483648
        %v1540 = vsel %vm1538, %v1539, %v1530
        %v1541 = vsel %vm1534, %v1537, %v1540
        %v1542 = vsel %vm1531, nan, %v1541
        %1543 = vst [vmem:[%s202] sm:$0xff] %v457
        %1544 = vst [vmem:[%s202 + $0x8] sm:$0xff] %v612
        %1545 = vst [vmem:[%s202 + $0x10] sm:$0xff] %v767
        %1546 = vst [vmem:[%s202 + $0x18] sm:$0xff] %v922
        %1547 = vst [vmem:[%s202 + $0x20] sm:$0xff] %v1077
        %1548 = vst [vmem:[%s202 + $0x28] sm:$0xff] %v1232
        %1549 = vst [vmem:[%s202 + $0x30] sm:$0xff] %v1387
        %1550 = vst [vmem:[%s202 + $0x38] sm:$0xff] %v1542
        %s1551 = sand.u32 %s117, 1
        %s1552 = scalar_lea.sflag [#allocation3], %s1551
        %s1553 = sand.u32 %s117, 1
        %s1554 = smul.addr %s1553, 64
        %s1555 = scalar_lea.vmem [#allocation2], %s1554
        // Predicated region
        $region33: #{fourier_layer.1} parent=31 // pred_check
          %p1556 = pneg %p127
        $region34: #{fourier_layer.1} parent=31 // pred_check_branch
          %1558 = sbr.rel (%p1556) target = $region36
        $region35: #{fourier_layer.1} parent=31 // pred_region
          %s1559 = smul.u32 8, %s21
          %1561 = vsyncadd %s1552, 0
          %s1562 = sadd.s32 %s22, %s1559
          %s1563 = smul.addr %s1562, 8
          %s1564 = scalar_lea.hbm %s3, %s1563
          %s1565 = sshll.u32 %s1555, 4
          %s1566 = int_to_ptr.vmem [resolvable:$true] %s1565
          %s1567 = sshll.u32 %s1564, 4
          %s1568 = int_to_ptr.hbm [resolvable:$true] %s1567
          %1573 = dma.vmem_to_hbm [thread:$0]  %s1566, 1024, %s1568, %s1552, 128, 128, 8
        $region36: #{fourier_layer.1} parent=31 // pred_fallthru
          _
      $region32: #{fourier_layer.1} parent=5 // pred_fallthru
        _
      %p1574 = scmp.le.s32.totalorder 2, %s12
      // Predicated region
      $region37: #{fourier_layer.1} parent=5 // pred_check
        %p1575 = pneg %p1574
      $region38: #{fourier_layer.1} parent=5 // pred_check_branch
        %1577 = sbr.rel (%p1575) target = $region40
      $region39: #{fourier_layer.1} parent=5 // pred_region
        %s1578 = ssub.s32 %s12, 2
        // Predicated region
        $region41: #{fourier_layer.1} parent=39 // pred_check
          %p1579 = pneg %p133
        $region42: #{fourier_layer.1} parent=39 // pred_check_branch
          %1581 = sbr.rel (%p1579) target = $region44
        $region43: #{fourier_layer.1} parent=39 // pred_region
          %s1582 = sand.u32 %s118, 1
          %s1583 = scalar_lea.sflag [#allocation3], %s1582
          %s1584 = sand.u32 %s118, 1
          %s1585 = smul.addr %s1584, 64
          %s1586 = scalar_lea.vmem [#allocation2], %s1585
          %1588 = dma.done %s1583, 1024
        $region44: #{fourier_layer.1} parent=39 // pred_fallthru
          _
      $region40: #{fourier_layer.1} parent=5 // pred_fallthru
        _
    $region6: #{fourier_layer.1} parent=1 // loop_footer
      %s16 = sadd.s32 1, %s12
    $region7: #{fourier_layer.1} parent=1 // loop_footer_branch
      %11 = sbr.rel target = $region3
    $region8: #{fourier_layer.1} parent=1 // loop_exit
      _
    %1589 = vsyncpa [#allocation3], 1
    %s1590 = scalar_lea.sflag [#allocation3], 1
    %1591 = vsyncpa %s1590, 1

</llo_original>
